<compile_context>
chip_gen: v6e
topology: v6e:2x2x1
jax: 0.10.0
libtpu: 0.0.40
codegen_flags: <defaults>
</compile_context>

<pallas_src>
import jax
import jax.numpy as jnp
from jax.experimental import pallas as pl
from jax.experimental.pallas import tpu as pltpu


def _round_up(v, m):
    return ((v + m - 1) // m) * m


# ----------------------------------------------------------------------------
# Pallas kernel: one grid step processes a block of `gb` whole graphs
# (two GCN layers + mean pool + classifier, fully fused, block-diagonal Â).
# ----------------------------------------------------------------------------
def temporal_gcn_kernel(a_ref, x_ref, pm_ref, w1_ref, w2_ref, wc_ref, b_ref,
                        out_ref, a_bd_ref):
    gb, n, _ = a_ref.shape                        # graphs/block, (padded) nodes/graph
    hp = w1_ref.shape[1]                          # padded hidden
    op = wc_ref.shape[1]                          # padded output
    f32, bf16 = jnp.float32, jnp.bfloat16

    biases = b_ref[...]                           # (8, P) f32, single resident tile
    b1 = biases[0:1, 0:hp]                        # (1, Hp)
    b2 = biases[1:2, 0:hp]                        # (1, Hp)
    bc = biases[2:3, 0:op]                        # (1, Op)

    # ---- assemble the block-diagonal Â for this block of graphs -------------
    # Re-zeroed every step (a handful of vector stores — negligible next to the
    # matmuls) so the kernel stays correct under megacore "parallel" grid
    # splitting, where a given core may never execute program_id == 0.
    a_bd_ref[...] = jnp.zeros_like(a_bd_ref)
    for g in range(gb):                           # static unroll, static offsets
        a_bd_ref[g * n:(g + 1) * n, g * n:(g + 1) * n] = a_ref[g]
    a_bd = a_bd_ref[...]                          # (gb*n, gb*n) bf16

    # ---- GCN layer 1: relu(Â @ (X @ W1) + b1) --------------------------------
    xw = jnp.dot(x_ref[...], w1_ref[...],
                 preferred_element_type=f32)                       # (gb*n, Hp) f32
    h1 = jnp.maximum(
        jnp.dot(a_bd, xw.astype(bf16), preferred_element_type=f32) + b1,
        0.0)                                                       # f32 bias/ReLU (VPU)
    h1b = h1.astype(bf16)                          # single bf16 rebind; f32 h1 dies

    # ---- GCN layer 2: relu(Â @ (h1 @ W2) + b2) -------------------------------
    hw = jnp.dot(h1b, w2_ref[...], preferred_element_type=f32)     # (gb*n, Hp) f32
    h2 = jnp.maximum(
        jnp.dot(a_bd, hw.astype(bf16), preferred_element_type=f32) + b2,
        0.0)

    # ---- global mean pool as one small MXU matmul ----------------------------
    # pm[g, g*n + i] = 1/|nodes of graph g| for valid nodes, 0 elsewhere.
    hg = jnp.dot(pm_ref[...].astype(bf16), h2.astype(bf16),
                 preferred_element_type=f32)                        # (gb, Hp) f32

    # ---- classifier: lane-dense (gb, Op) slab -> single unmasked store -------
    out_ref[...] = jnp.dot(hg.astype(bf16), wc_ref[...],
                           preferred_element_type=f32) + bc


# ----------------------------------------------------------------------------
# Wrapper: pad to TPU-friendly shapes, cast GEMM inputs to bf16, launch grid.
# ----------------------------------------------------------------------------
def temporal_gcn_forward(a_blocks, x, pool_w, w1, b1, w2, b2, wc, bc,
                         *, graphs_per_block=8):
    """Fused TemporalGCN forward.

    a_blocks : (G, n, n)  per-graph normalized adjacency (block-diagonal batch)
    x        : (G, n, F)  flattened node features
    pool_w   : (G, n)     mean-pool weights (1/|nodes of g| for valid nodes, 0 pad)
    w1 (F,H)  b1 (H,)   w2 (H,H)  b2 (H,)   wc (O,H)  bc (O,)   (torch layouts)
    graphs_per_block: pick so gb*n_pad matches the MXU contraction width
                      (256 on v6e/v7x -> gb=8 at n=32; 128 on v5e -> gb=4).
    Returns (G, O) logits (float32).
    """
    G, n, F = x.shape
    H = w1.shape[1]
    O = wc.shape[0]

    LANE, SUB = 128, 8
    Hp = _round_up(H, LANE)
    Op = _round_up(O, LANE)
    P = max(Hp, Op)
    gb = graphs_per_block
    Gp = _round_up(G, gb)
    n_pad = _round_up(n, 16)          # bf16 sublane quantum
    Fp = _round_up(F, 16)             # NOT padded to 128 (block = full array dim)
    M = gb * n_pad                    # rows/cols of the block-diagonal Â tile

    bf16, f32 = jnp.bfloat16, jnp.float32

    # Zero-padding preserves semantics: padded nodes/graphs have zero Â
    # rows/cols and zero pooling weight; padded feature/output columns multiply
    # zero weights. (Padded rows carry relu(bias) garbage that the zero pooling
    # weights and zero Â columns neutralize.)
    a_p = jnp.zeros((Gp, n_pad, n_pad), bf16).at[:G, :n, :n].set(a_blocks.astype(bf16))
    x_p = (jnp.zeros((Gp, n_pad, Fp), bf16).at[:G, :n, :F].set(x.astype(bf16))
           .reshape(Gp * n_pad, Fp))

    # Block-structured pooling matrix: row r (global graph) carries its graph's
    # mean-pool weights at columns [(r % gb)*n_pad, (r % gb)*n_pad + n_pad).
    pw_p = jnp.zeros((Gp, n_pad), f32).at[:G, :n].set(pool_w.astype(f32))
    col = ((jnp.arange(Gp, dtype=jnp.int32)[:, None] % gb) * n_pad
           + jnp.arange(n_pad, dtype=jnp.int32)[None, :])
    pm = jnp.zeros((Gp, M), f32).at[jnp.arange(Gp)[:, None], col].set(pw_p)

    w1_p = jnp.zeros((Fp, Hp), bf16).at[:F, :H].set(w1.astype(bf16))
    w2_p = jnp.zeros((Hp, Hp), bf16).at[:H, :H].set(w2.astype(bf16))
    wc_p = jnp.zeros((Hp, Op), bf16).at[:H, :O].set(wc.T.astype(bf16))

    # Pack the three tiny bias vectors into one lane-dense f32 tile (one DMA).
    bias_p = (jnp.zeros((SUB, P), f32)
              .at[0, :H].set(b1.astype(f32))
              .at[1, :H].set(b2.astype(f32))
              .at[2, :O].set(bc.astype(f32)))

    grid = (Gp // gb,)
    out_padded = pl.pallas_call(
        temporal_gcn_kernel,
        out_shape=jax.ShapeDtypeStruct((Gp, Op), f32),
        grid_spec=pltpu.PrefetchScalarGridSpec(
            num_scalar_prefetch=0,
            grid=grid,
            in_specs=[
                pl.BlockSpec((gb, n_pad, n_pad), lambda i: (i, 0, 0)),  # Â blocks (streamed)
                pl.BlockSpec((M, Fp), lambda i: (i, 0)),                # X, F not 128-padded
                pl.BlockSpec((gb, M), lambda i: (i, 0)),                # pooling matrix
                pl.BlockSpec((Fp, Hp), lambda i: (0, 0)),               # W1 (resident)
                pl.BlockSpec((Hp, Hp), lambda i: (0, 0)),               # W2 (resident)
                pl.BlockSpec((Hp, Op), lambda i: (0, 0)),               # Wc^T (resident)
                pl.BlockSpec((SUB, P), lambda i: (0, 0)),               # packed biases
            ],
            out_specs=pl.BlockSpec((gb, Op), lambda i: (i, 0)),
            scratch_shapes=[pltpu.VMEM((M, M), bf16)],                  # block-diagonal Â
        ),
        compiler_params=pltpu.CompilerParams(
            dimension_semantics=("parallel",),      # graph blocks are independent
            vmem_limit_bytes=32 * 1024 * 1024,      # explicit: v5e scoped default is 16 MiB
        ),
    )(a_p, x_p, pm, w1_p, w2_p, wc_p, bias_p)

    return out_padded[:G, :O]


# ----------------------------------------------------------------------------
# Glue: per-graph normalized adjacency blocks + mean-pool weights (plain JAX).
# ----------------------------------------------------------------------------
def build_normalized_adjacency_blocks(edge_index, num_graphs, nodes_per_graph):
    """PyG gcn_norm (A + I, symmetric D^-1/2 norm), as (G, n, n) diagonal blocks.

    Assumes the standard PyG batching layout: equal-size graphs laid out
    contiguously, edges never crossing graph boundaries, and edge_index
    containing no pre-existing self loops (PyG's add_remaining_self_loops would
    not double-count them; this helper would).
    """
    n = nodes_per_graph
    src, dst = edge_index[0], edge_index[1]
    g = dst // n
    adj = jnp.zeros((num_graphs, n, n), jnp.float32)
    adj = adj.at[g, dst % n, src % n].add(1.0)          # message j -> i : A[i, j] = 1
    adj = adj + jnp.eye(n, dtype=jnp.float32)[None]     # self loops
    deg = jnp.sum(adj, axis=-1)
    dinv = jnp.where(deg > 0, jax.lax.rsqrt(deg), 0.0)
    return dinv[:, :, None] * adj * dinv[:, None, :]


def build_mean_pool_weights(batch, num_graphs, nodes_per_graph):
    """(G, n) weights realizing global_mean_pool for the contiguous layout."""
    counts = jnp.zeros((num_graphs,), jnp.float32).at[batch].add(1.0)
    pw = 1.0 / jnp.clip(counts, 1.0, None)
    return jnp.broadcast_to(pw[:, None], (num_graphs, nodes_per_graph))


# ----------------------------------------------------------------------------
# Main
# ----------------------------------------------------------------------------
if __name__ == "__main__":
    key = jax.random.PRNGKey(0)

    # 16 graphs x 32 nodes, temporal node features (C=4, T=4) -> input_dim 16.
    num_graphs = 16
    nodes_per_graph = 32
    N = num_graphs * nodes_per_graph
    C, T = 4, 4
    input_dim = C * T            # data.x has dim > 2 -> flattened per node
    hidden_dim = 128             # lane-dense hidden (multiple of 128)
    output_dim = 8

    keys = jax.random.split(key, 7)

    # data.x : (N, C, T) temporal node features -> flattened to (N, input_dim)
    x_raw = jax.random.normal(keys[0], (N, C, T), jnp.float32)
    x = x_raw.reshape(N, -1)

    # data.edge_index : ring graph within each graph, undirected
    edges = []
    for g in range(num_graphs):
        base = g * nodes_per_graph
        for i in range(nodes_per_graph):
            a = base + i
            b = base + (i + 1) % nodes_per_graph
            edges.append((a, b))
            edges.append((b, a))
    edge_index = jnp.array(edges, jnp.int32).T          # (2, E)

    # data.batch : graph id per node (contiguous equal-size graphs)
    batch = jnp.repeat(jnp.arange(num_graphs, dtype=jnp.int32), nodes_per_graph)

    # Deterministic parameter init (synthetic; not a checkpoint load)
    w1 = jax.random.normal(keys[1], (input_dim, hidden_dim), jnp.float32) * 0.1
    b1 = jax.random.normal(keys[2], (hidden_dim,), jnp.float32) * 0.1
    w2 = jax.random.normal(keys[3], (hidden_dim, hidden_dim), jnp.float32) * 0.1
    b2 = jax.random.normal(keys[4], (hidden_dim,), jnp.float32) * 0.1
    wc = jax.random.normal(keys[5], (output_dim, hidden_dim), jnp.float32) * 0.1
    bc = jax.random.normal(keys[6], (output_dim,), jnp.float32) * 0.1

    a_blocks = build_normalized_adjacency_blocks(edge_index, num_graphs, nodes_per_graph)
    pool_w = build_mean_pool_weights(batch, num_graphs, nodes_per_graph)
    x_g = x.reshape(num_graphs, nodes_per_graph, input_dim)

    # gb=8 -> block-diagonal aggregation width 8*32 = 256 (native v6e/v7x MXU),
    # grid length 2 (even -> balanced across v7x's two TensorCores).
    out = temporal_gcn_forward(a_blocks, x_g, pool_w, w1, b1, w2, b2, wc, bc,
                               graphs_per_block=8)
    out = jax.block_until_ready(out)

    # Pure-JAX reference with the same bf16 GEMM inputs / f32 accumulation.
    bf = jnp.bfloat16
    ab, xb = a_blocks.astype(bf), x_g.astype(bf)
    xw = jnp.einsum('gnf,fh->gnh', xb, w1.astype(bf),
                    preferred_element_type=jnp.float32)
    h1 = jnp.maximum(jnp.einsum('gij,gjh->gih', ab, xw.astype(bf),
                                preferred_element_type=jnp.float32) + b1, 0.0)
    hw = jnp.einsum('gnf,fh->gnh', h1.astype(bf), w2.astype(bf),
                    preferred_element_type=jnp.float32)
    h2 = jnp.maximum(jnp.einsum('gij,gjh->gih', ab, hw.astype(bf),
                                preferred_element_type=jnp.float32) + b2, 0.0)
    hg = jnp.einsum('gn,gnh->gh', pool_w.astype(bf), h2.astype(bf),
                    preferred_element_type=jnp.float32)
    ref = jnp.dot(hg.astype(bf), wc.T.astype(bf),
                  preferred_element_type=jnp.float32) + bc

    assert out.shape == (num_graphs, output_dim)
    max_err = float(jnp.max(jnp.abs(out - ref)))
    assert jnp.allclose(out, ref, atol=2e-2, rtol=2e-2), f"max abs err {max_err}"

    print("KERNEL_OK")
</pallas_src>

<mosaic_0001>
module attributes {stable_mosaic.version = 11 : i64} {
  func.func @temporal_gcn_kernel(%arg0: i32, %arg1: memref<8x32x32xbf16, #tpu.memory_space<vmem>>, %arg2: memref<256x16xbf16, #tpu.memory_space<vmem>>, %arg3: memref<8x256xf32, #tpu.memory_space<vmem>>, %arg4: memref<16x128xbf16, #tpu.memory_space<vmem>>, %arg5: memref<128x128xbf16, #tpu.memory_space<vmem>>, %arg6: memref<128x128xbf16, #tpu.memory_space<vmem>>, %arg7: memref<8x128xf32, #tpu.memory_space<vmem>>, %arg8: memref<8x128xf32, #tpu.memory_space<vmem>>, %arg9: memref<256x256xbf16, #tpu.memory_space<vmem>>) attributes {dimension_semantics = [#tpu.dimension_semantics<parallel>], iteration_bounds = array<i64: 2>, scalar_prefetch = 0 : i64, scratch_operands = 1 : i64, tpu.core_type = #tpu.core_type<tc>, window_params = [{transform_indices = @transform_0, window_bounds = array<i64: 8, 32, 32>}, {transform_indices = @transform_1, window_bounds = array<i64: 256, 16>}, {transform_indices = @transform_2, window_bounds = array<i64: 8, 256>}, {pipeline_mode = #tpu.pipeline_mode<synchronous>, transform_indices = @transform_3, window_bounds = array<i64: 16, 128>}, {pipeline_mode = #tpu.pipeline_mode<synchronous>, transform_indices = @transform_4, window_bounds = array<i64: 128, 128>}, {pipeline_mode = #tpu.pipeline_mode<synchronous>, transform_indices = @transform_5, window_bounds = array<i64: 128, 128>}, {pipeline_mode = #tpu.pipeline_mode<synchronous>, transform_indices = @transform_6, window_bounds = array<i64: 8, 128>}, {transform_indices = @transform_7, window_bounds = array<i64: 8, 128>}]} {
    %c0 = arith.constant 0 : index
    %c0_0 = arith.constant 0 : index
    %0 = vector.load %arg7[%c0, %c0_0] : memref<8x128xf32, #tpu.memory_space<vmem>>, vector<8x128xf32>
    %1 = vector.extract_strided_slice %0 {offsets = [0, 0], sizes = [1, 128], strides = [1, 1]} : vector<8x128xf32> to vector<1x128xf32>
    %2 = vector.extract_strided_slice %0 {offsets = [1, 0], sizes = [1, 128], strides = [1, 1]} : vector<8x128xf32> to vector<1x128xf32>
    %3 = vector.extract_strided_slice %0 {offsets = [2, 0], sizes = [1, 128], strides = [1, 1]} : vector<8x128xf32> to vector<1x128xf32>
    %cst = arith.constant 0.000000e+00 : bf16
    %4 = vector.broadcast %cst : bf16 to vector<256x256xbf16>
    %c0_1 = arith.constant 0 : index
    %c0_2 = arith.constant 0 : index
    %5 = vector.load %arg9[%c0_1, %c0_2] : memref<256x256xbf16, #tpu.memory_space<vmem>>, vector<256x256xbf16>
    tpu.vector_store %arg9[%c0_1, %c0_2], %4 {strides = array<i32>} : memref<256x256xbf16, #tpu.memory_space<vmem>>, vector<256x256xbf16>,
    %c0_3 = arith.constant 0 : index
    %c0_4 = arith.constant 0 : index
    %c0_5 = arith.constant 0 : index
    %6 = vector.load %arg1[%c0_3, %c0_4, %c0_5] : memref<8x32x32xbf16, #tpu.memory_space<vmem>>, vector<1x32x32xbf16>
    %7 = vector.shape_cast %6 : vector<1x32x32xbf16> to vector<32x32xbf16>
    %c0_6 = arith.constant 0 : index
    %c0_7 = arith.constant 0 : index
    %8 = vector.load %arg9[%c0_6, %c0_7] : memref<256x256xbf16, #tpu.memory_space<vmem>>, vector<32x32xbf16>
    tpu.vector_store %arg9[%c0_6, %c0_7], %7 {strides = array<i32>} : memref<256x256xbf16, #tpu.memory_space<vmem>>, vector<32x32xbf16>,
    %c1 = arith.constant 1 : index
    %c0_8 = arith.constant 0 : index
    %c0_9 = arith.constant 0 : index
    %9 = vector.load %arg1[%c1, %c0_8, %c0_9] : memref<8x32x32xbf16, #tpu.memory_space<vmem>>, vector<1x32x32xbf16>
    %10 = vector.shape_cast %9 : vector<1x32x32xbf16> to vector<32x32xbf16>
    %c32 = arith.constant 32 : index
    %c32_10 = arith.constant 32 : index
    %11 = vector.load %arg9[%c32, %c32_10] : memref<256x256xbf16, #tpu.memory_space<vmem>>, vector<32x32xbf16>
    tpu.vector_store %arg9[%c32, %c32_10], %10 {strides = array<i32>} : memref<256x256xbf16, #tpu.memory_space<vmem>>, vector<32x32xbf16>,
    %c2 = arith.constant 2 : index
    %c0_11 = arith.constant 0 : index
    %c0_12 = arith.constant 0 : index
    %12 = vector.load %arg1[%c2, %c0_11, %c0_12] : memref<8x32x32xbf16, #tpu.memory_space<vmem>>, vector<1x32x32xbf16>
    %13 = vector.shape_cast %12 : vector<1x32x32xbf16> to vector<32x32xbf16>
    %c64 = arith.constant 64 : index
    %c64_13 = arith.constant 64 : index
    %14 = vector.load %arg9[%c64, %c64_13] : memref<256x256xbf16, #tpu.memory_space<vmem>>, vector<32x32xbf16>
    tpu.vector_store %arg9[%c64, %c64_13], %13 {strides = array<i32>} : memref<256x256xbf16, #tpu.memory_space<vmem>>, vector<32x32xbf16>,
    %c3 = arith.constant 3 : index
    %c0_14 = arith.constant 0 : index
    %c0_15 = arith.constant 0 : index
    %15 = vector.load %arg1[%c3, %c0_14, %c0_15] : memref<8x32x32xbf16, #tpu.memory_space<vmem>>, vector<1x32x32xbf16>
    %16 = vector.shape_cast %15 : vector<1x32x32xbf16> to vector<32x32xbf16>
    %c96 = arith.constant 96 : index
    %c96_16 = arith.constant 96 : index
    %17 = vector.load %arg9[%c96, %c96_16] : memref<256x256xbf16, #tpu.memory_space<vmem>>, vector<32x32xbf16>
    tpu.vector_store %arg9[%c96, %c96_16], %16 {strides = array<i32>} : memref<256x256xbf16, #tpu.memory_space<vmem>>, vector<32x32xbf16>,
    %c4 = arith.constant 4 : index
    %c0_17 = arith.constant 0 : index
    %c0_18 = arith.constant 0 : index
    %18 = vector.load %arg1[%c4, %c0_17, %c0_18] : memref<8x32x32xbf16, #tpu.memory_space<vmem>>, vector<1x32x32xbf16>
    %19 = vector.shape_cast %18 : vector<1x32x32xbf16> to vector<32x32xbf16>
    %c128 = arith.constant 128 : index
    %c128_19 = arith.constant 128 : index
    %20 = vector.load %arg9[%c128, %c128_19] : memref<256x256xbf16, #tpu.memory_space<vmem>>, vector<32x32xbf16>
    tpu.vector_store %arg9[%c128, %c128_19], %19 {strides = array<i32>} : memref<256x256xbf16, #tpu.memory_space<vmem>>, vector<32x32xbf16>,
    %c5 = arith.constant 5 : index
    %c0_20 = arith.constant 0 : index
    %c0_21 = arith.constant 0 : index
    %21 = vector.load %arg1[%c5, %c0_20, %c0_21] : memref<8x32x32xbf16, #tpu.memory_space<vmem>>, vector<1x32x32xbf16>
    %22 = vector.shape_cast %21 : vector<1x32x32xbf16> to vector<32x32xbf16>
    %c160 = arith.constant 160 : index
    %c160_22 = arith.constant 160 : index
    %23 = vector.load %arg9[%c160, %c160_22] : memref<256x256xbf16, #tpu.memory_space<vmem>>, vector<32x32xbf16>
    tpu.vector_store %arg9[%c160, %c160_22], %22 {strides = array<i32>} : memref<256x256xbf16, #tpu.memory_space<vmem>>, vector<32x32xbf16>,
    %c6 = arith.constant 6 : index
    %c0_23 = arith.constant 0 : index
    %c0_24 = arith.constant 0 : index
    %24 = vector.load %arg1[%c6, %c0_23, %c0_24] : memref<8x32x32xbf16, #tpu.memory_space<vmem>>, vector<1x32x32xbf16>
    %25 = vector.shape_cast %24 : vector<1x32x32xbf16> to vector<32x32xbf16>
    %c192 = arith.constant 192 : index
    %c192_25 = arith.constant 192 : index
    %26 = vector.load %arg9[%c192, %c192_25] : memref<256x256xbf16, #tpu.memory_space<vmem>>, vector<32x32xbf16>
    tpu.vector_store %arg9[%c192, %c192_25], %25 {strides = array<i32>} : memref<256x256xbf16, #tpu.memory_space<vmem>>, vector<32x32xbf16>,
    %c7 = arith.constant 7 : index
    %c0_26 = arith.constant 0 : index
    %c0_27 = arith.constant 0 : index
    %27 = vector.load %arg1[%c7, %c0_26, %c0_27] : memref<8x32x32xbf16, #tpu.memory_space<vmem>>, vector<1x32x32xbf16>
    %28 = vector.shape_cast %27 : vector<1x32x32xbf16> to vector<32x32xbf16>
    %c224 = arith.constant 224 : index
    %c224_28 = arith.constant 224 : index
    %29 = vector.load %arg9[%c224, %c224_28] : memref<256x256xbf16, #tpu.memory_space<vmem>>, vector<32x32xbf16>
    tpu.vector_store %arg9[%c224, %c224_28], %28 {strides = array<i32>} : memref<256x256xbf16, #tpu.memory_space<vmem>>, vector<32x32xbf16>,
    %c0_29 = arith.constant 0 : index
    %c0_30 = arith.constant 0 : index
    %30 = vector.load %arg9[%c0_29, %c0_30] : memref<256x256xbf16, #tpu.memory_space<vmem>>, vector<256x256xbf16>
    %c0_31 = arith.constant 0 : index
    %c0_32 = arith.constant 0 : index
    %31 = vector.load %arg2[%c0_31, %c0_32] : memref<256x16xbf16, #tpu.memory_space<vmem>>, vector<256x16xbf16>
    %c0_33 = arith.constant 0 : index
    %c0_34 = arith.constant 0 : index
    %32 = vector.load %arg4[%c0_33, %c0_34] : memref<16x128xbf16, #tpu.memory_space<vmem>>, vector<16x128xbf16>
    %cst_35 = arith.constant dense<0.000000e+00> : vector<256x128xf32>
    %33 = tpu.matmul %31, %32, %cst_35 {dimension_numbers = #tpu.dot_dimension_numbers<[1], [0], [0], [1], [0, 0, 1, 1], [], []>} : vector<256x16xbf16>, vector<16x128xbf16>, vector<256x128xf32> -> vector<256x128xf32>
    %34 = arith.truncf %33 : vector<256x128xf32> to vector<256x128xbf16>
    %cst_36 = arith.constant dense<0.000000e+00> : vector<256x128xf32>
    %35 = tpu.matmul %30, %34, %cst_36 {dimension_numbers = #tpu.dot_dimension_numbers<[1], [0], [0], [1], [0, 0, 1, 1], [], []>} : vector<256x256xbf16>, vector<256x128xbf16>, vector<256x128xf32> -> vector<256x128xf32>
    %36 = vector.broadcast %1 : vector<1x128xf32> to vector<256x128xf32>
    %37 = arith.addf %35, %36 : vector<256x128xf32>
    %cst_37 = arith.constant 0.000000e+00 : f32
    %38 = vector.broadcast %cst_37 : f32 to vector<256x128xf32>
    %39 = arith.maximumf %37, %38 : vector<256x128xf32>
    %40 = arith.truncf %39 : vector<256x128xf32> to vector<256x128xbf16>
    %c0_38 = arith.constant 0 : index
    %c0_39 = arith.constant 0 : index
    %41 = vector.load %arg5[%c0_38, %c0_39] : memref<128x128xbf16, #tpu.memory_space<vmem>>, vector<128x128xbf16>
    %cst_40 = arith.constant dense<0.000000e+00> : vector<256x128xf32>
    %42 = tpu.matmul %40, %41, %cst_40 {dimension_numbers = #tpu.dot_dimension_numbers<[1], [0], [0], [1], [0, 0, 1, 1], [], []>} : vector<256x128xbf16>, vector<128x128xbf16>, vector<256x128xf32> -> vector<256x128xf32>
    %43 = arith.truncf %42 : vector<256x128xf32> to vector<256x128xbf16>
    %cst_41 = arith.constant dense<0.000000e+00> : vector<256x128xf32>
    %44 = tpu.matmul %30, %43, %cst_41 {dimension_numbers = #tpu.dot_dimension_numbers<[1], [0], [0], [1], [0, 0, 1, 1], [], []>} : vector<256x256xbf16>, vector<256x128xbf16>, vector<256x128xf32> -> vector<256x128xf32>
    %45 = vector.broadcast %2 : vector<1x128xf32> to vector<256x128xf32>
    %46 = arith.addf %44, %45 : vector<256x128xf32>
    %cst_42 = arith.constant 0.000000e+00 : f32
    %47 = vector.broadcast %cst_42 : f32 to vector<256x128xf32>
    %48 = arith.maximumf %46, %47 : vector<256x128xf32>
    %c0_43 = arith.constant 0 : index
    %c0_44 = arith.constant 0 : index
    %49 = vector.load %arg3[%c0_43, %c0_44] : memref<8x256xf32, #tpu.memory_space<vmem>>, vector<8x256xf32>
    %50 = arith.truncf %49 : vector<8x256xf32> to vector<8x256xbf16>
    %51 = arith.truncf %48 : vector<256x128xf32> to vector<256x128xbf16>
    %cst_45 = arith.constant dense<0.000000e+00> : vector<8x128xf32>
    %52 = tpu.matmul %50, %51, %cst_45 {dimension_numbers = #tpu.dot_dimension_numbers<[1], [0], [0], [1], [0, 0, 1, 1], [], []>} : vector<8x256xbf16>, vector<256x128xbf16>, vector<8x128xf32> -> vector<8x128xf32>
    %53 = arith.truncf %52 : vector<8x128xf32> to vector<8x128xbf16>
    %c0_46 = arith.constant 0 : index
    %c0_47 = arith.constant 0 : index
    %54 = vector.load %arg6[%c0_46, %c0_47] : memref<128x128xbf16, #tpu.memory_space<vmem>>, vector<128x128xbf16>
    %cst_48 = arith.constant dense<0.000000e+00> : vector<8x128xf32>
    %55 = tpu.matmul %53, %54, %cst_48 {dimension_numbers = #tpu.dot_dimension_numbers<[1], [0], [0], [1], [0, 0, 1, 1], [], []>} : vector<8x128xbf16>, vector<128x128xbf16>, vector<8x128xf32> -> vector<8x128xf32>
    %56 = vector.broadcast %3 : vector<1x128xf32> to vector<8x128xf32>
    %57 = arith.addf %55, %56 : vector<8x128xf32>
    %c0_49 = arith.constant 0 : index
    %c0_50 = arith.constant 0 : index
    %58 = vector.load %arg8[%c0_49, %c0_50] : memref<8x128xf32, #tpu.memory_space<vmem>>, vector<8x128xf32>
    tpu.vector_store %arg8[%c0_49, %c0_50], %57 {strides = array<i32>} : memref<8x128xf32, #tpu.memory_space<vmem>>, vector<8x128xf32>,
    return
  }
  func.func @transform_0(%arg0: i32) -> (i32, i32, i32) {
    %c0_i32 = arith.constant 0 : i32
    %c0_i32_0 = arith.constant 0 : i32
    %c0_i32_1 = arith.constant 0 : i32
    return %arg0, %c0_i32, %c0_i32_0 : i32, i32, i32
  }
  func.func @transform_1(%arg0: i32) -> (i32, i32) {
    %c0_i32 = arith.constant 0 : i32
    %c0_i32_0 = arith.constant 0 : i32
    return %arg0, %c0_i32 : i32, i32
  }
  func.func @transform_2(%arg0: i32) -> (i32, i32) {
    %c0_i32 = arith.constant 0 : i32
    %c0_i32_0 = arith.constant 0 : i32
    return %arg0, %c0_i32 : i32, i32
  }
  func.func @transform_3(%arg0: i32) -> (i32, i32) {
    %c0_i32 = arith.constant 0 : i32
    %c0_i32_0 = arith.constant 0 : i32
    %c0_i32_1 = arith.constant 0 : i32
    return %c0_i32, %c0_i32_0 : i32, i32
  }
  func.func @transform_4(%arg0: i32) -> (i32, i32) {
    %c0_i32 = arith.constant 0 : i32
    %c0_i32_0 = arith.constant 0 : i32
    %c0_i32_1 = arith.constant 0 : i32
    return %c0_i32, %c0_i32_0 : i32, i32
  }
  func.func @transform_5(%arg0: i32) -> (i32, i32) {
    %c0_i32 = arith.constant 0 : i32
    %c0_i32_0 = arith.constant 0 : i32
    %c0_i32_1 = arith.constant 0 : i32
    return %c0_i32, %c0_i32_0 : i32, i32
  }
  func.func @transform_6(%arg0: i32) -> (i32, i32) {
    %c0_i32 = arith.constant 0 : i32
    %c0_i32_0 = arith.constant 0 : i32
    %c0_i32_1 = arith.constant 0 : i32
    return %c0_i32, %c0_i32_0 : i32, i32
  }
  func.func @transform_7(%arg0: i32) -> (i32, i32) {
    %c0_i32 = arith.constant 0 : i32
    %c0_i32_0 = arith.constant 0 : i32
    return %arg0, %c0_i32 : i32, i32
  }
}

</mosaic_0001>

<llo_original>
// kernel: tpu_custom_call.1
$region0: #{tpu_custom_call.1}
  #allocation0 [shape = 'u32[]', space=smem, size = 0x4, offset = 0x4, fixed_abs, tag = 'smem constant byte address 0x4 - core index']
  #allocation1 [shape = 'u32[144,128]{1,0:T(1,128)}', space=vmem, size = 0x12000, scoped, tag = 'internal scratch']
  #allocation2 [shape = 'bf16[256,256]{1,0:T(8,128)(2,1)}', space=vmem, size = 0x20000, scoped, tag = 'scratch operand']
  %s0 = inlined_call_operand.vmem [shape: bf16[16,32,32], index: 0, kind: input, shape index: {}]
  %s1 = inlined_call_operand.vmem [shape: bf16[512,16], index: 1, kind: input, shape index: {}]
  %s2 = inlined_call_operand.vmem [shape: f32[16,256], index: 2, kind: input, shape index: {}]
  %s3 = inlined_call_operand.hbm [shape: bf16[16,128], index: 3, kind: input, shape index: {}]
  %s4 = inlined_call_operand.hbm [shape: bf16[128,128], index: 4, kind: input, shape index: {}]
  %s5 = inlined_call_operand.hbm [shape: bf16[128,128], index: 5, kind: input, shape index: {}]
  %s6 = inlined_call_operand.vmem [shape: f32[8,128], index: 6, kind: input, shape index: {}]
  %s7 = inlined_call_operand.hbm [shape: f32[16,128], index: 7, kind: output, shape index: {}]
  %s8 = sld [smem:[#allocation0]]
  $region73: #{tpu_custom_call.1} parent=0
    _
  %s10 = ssub.s32 1, %s8
  %s11 = scalar_select 0, %s10, %s8
  $region1: #{tpu_custom_call.1} parent=0
    #allocation3 [shape = 'u8[4096]{0}', space=vmem, size = 0x1000, scoped, tag = 'input window, operand 3, single buffered']
    #allocation4 [shape = 's32[2]{0}', space=sflag, size = 0x8, scoped, tag = 'scoped memory for tpu_custom_call.1']
    #allocation5 [shape = 's32[2]{0}', space=sflag, size = 0x8, scoped, tag = 'scoped memory for tpu_custom_call.1']
    #allocation6 [shape = 'u8[32768]{0}', space=vmem, size = 0x8000, scoped, tag = 'input window, operand 4, single buffered']
    #allocation7 [shape = 's32[1]{0}', space=sflag, size = 0x4, scoped, tag = 'scoped memory for tpu_custom_call.1']
    #allocation8 [shape = 'u8[32768]{0}', space=vmem, size = 0x8000, scoped, tag = 'input window, operand 5, single buffered']
    #allocation9 [shape = 'u8[8192]{0}', space=vmem, size = 0x2000, scoped, tag = 'output window, operand 0']
    %12 = vsyncpa [#allocation4], 0
    %13 = vsyncpa [#allocation7], 0
    %14 = vsyncpa [#allocation5], 0
    %s15 = scalar_lea.sflag [#allocation5], 1
    %16 = vsyncpa %s15, 0
    loop: start=0, step=1, limit=4
    $region2: #{tpu_custom_call.1} parent=1 // loop_pre_header
      _
    $region3: #{tpu_custom_call.1} parent=1 // loop_header
      %s18 = sphi 0, %s22
      %p19 = scmp.ge.s32.totalorder %s18, 4
      %s28 = sphi 0, %s30
      %s31 = sphi 0, %s28
      %s32 = sphi 0, %s31
      %s48 = sphi 0, %s32
      %s54 = sphi 0, %s56
      %s57 = sphi 0, %s54
      %s58 = sphi 0, %s57
      %s74 = sphi 0, %s58
      %s80 = sphi 0, %s82
      %s83 = sphi 0, %s80
      %s84 = sphi 0, %s83
      %s100 = sphi 0, %s84
      %s104 = sphi 0, %s104
      %s106 = sphi 0, %s104
      %s107 = sphi 0, %s106
      %s121 = sphi 0, %s107
      %s125 = sphi 0, %s125
      %s127 = sphi 0, %s125
      %s128 = sphi 0, %s127
      %s142 = sphi 0, %s128
      %s146 = sphi 0, %s146
      %s148 = sphi 0, %s146
      %s149 = sphi 0, %s148
      %s163 = sphi 0, %s149
      %s167 = sphi 0, %s167
      %s169 = sphi 0, %s167
      %s170 = sphi 0, %s169
      %s184 = sphi 0, %s170
      %s190 = sphi 0, %s192
      %s193 = sphi 0, %s190
      %s194 = sphi 0, %s193
      %s210 = sphi 0, %s194
    $region4: #{tpu_custom_call.1} parent=1 // loop_header_branch
      %21 = sbr.rel (%p19) target = $region8
    $region5: #{tpu_custom_call.1} parent=1 // loop_body
      %s23 = ssub.s32 %s18, 1
      %s24 = ssub.s32 %s18, 2
      %s25 = sadd.s32 %s18, 1
      %s26 = ssub.s32 %s18, %s25
      %p27 = scmp.eq.s32.totalorder %s26, 0
      %s29 = sadd.s32 %s28, 1
      %s30 = scalar_select %p27, %s28, %s29
      %p33 = pneg %p27
      %p34 = scmp.eq.s32.totalorder %s18, 1
      %p35 = por %p33, %p34
      %p36 = scmp.ne.s32.totalorder %s28, %s31
      %p37 = scmp.eq.s32.totalorder %s18, 0
      %p38 = por %p36, %p37
      %p39 = scmp.ne.s32.totalorder %s28, %s31
      %p40 = scmp.eq.s32.totalorder %s23, 1
      %p41 = por %p39, %p40
      %p42 = scmp.ne.s32.totalorder %s31, %s32
      %p43 = scmp.eq.s32.totalorder %s23, 0
      %p44 = por %p42, %p43
      %p45 = scmp.ne.s32.totalorder %s31, %s32
      %p46 = scmp.eq.s32.totalorder %s24, 1
      %p47 = por %p45, %p46
      %p49 = scmp.ne.s32.totalorder %s32, %s48
      %p50 = scmp.eq.s32.totalorder %s24, 0
      %p51 = por %p49, %p50
      %s52 = ssub.s32 %s18, %s25
      %p53 = scmp.eq.s32.totalorder %s52, 0
      %s55 = sadd.s32 %s54, 1
      %s56 = scalar_select %p53, %s54, %s55
      %p59 = pneg %p53
      %p60 = scmp.eq.s32.totalorder %s18, 1
      %p61 = por %p59, %p60
      %p62 = scmp.ne.s32.totalorder %s54, %s57
      %p63 = scmp.eq.s32.totalorder %s18, 0
      %p64 = por %p62, %p63
      %p65 = scmp.ne.s32.totalorder %s54, %s57
      %p66 = scmp.eq.s32.totalorder %s23, 1
      %p67 = por %p65, %p66
      %p68 = scmp.ne.s32.totalorder %s57, %s58
      %p69 = scmp.eq.s32.totalorder %s23, 0
      %p70 = por %p68, %p69
      %p71 = scmp.ne.s32.totalorder %s57, %s58
      %p72 = scmp.eq.s32.totalorder %s24, 1
      %p73 = por %p71, %p72
      %p75 = scmp.ne.s32.totalorder %s58, %s74
      %p76 = scmp.eq.s32.totalorder %s24, 0
      %p77 = por %p75, %p76
      %s78 = ssub.s32 %s18, %s25
      %p79 = scmp.eq.s32.totalorder %s78, 0
      %s81 = sadd.s32 %s80, 1
      %s82 = scalar_select %p79, %s80, %s81
      %p85 = pneg %p79
      %p86 = scmp.eq.s32.totalorder %s18, 1
      %p87 = por %p85, %p86
      %p88 = scmp.ne.s32.totalorder %s80, %s83
      %p89 = scmp.eq.s32.totalorder %s18, 0
      %p90 = por %p88, %p89
      %p91 = scmp.ne.s32.totalorder %s80, %s83
      %p92 = scmp.eq.s32.totalorder %s23, 1
      %p93 = por %p91, %p92
      %p94 = scmp.ne.s32.totalorder %s83, %s84
      %p95 = scmp.eq.s32.totalorder %s23, 0
      %p96 = por %p94, %p95
      %p97 = scmp.ne.s32.totalorder %s83, %s84
      %p98 = scmp.eq.s32.totalorder %s24, 1
      %p99 = por %p97, %p98
      %p101 = scmp.ne.s32.totalorder %s84, %s100
      %p102 = scmp.eq.s32.totalorder %s24, 0
      %p103 = por %p101, %p102
      %s105 = sadd.s32 %s104, 1
      %p108 = scmp.eq.s32.totalorder %s18, 1
      %p109 = scmp.ne.s32.totalorder %s104, %s106
      %p110 = scmp.eq.s32.totalorder %s18, 0
      %p111 = por %p109, %p110
      %p112 = scmp.ne.s32.totalorder %s104, %s106
      %p113 = scmp.eq.s32.totalorder %s23, 1
      %p114 = por %p112, %p113
      %p115 = scmp.ne.s32.totalorder %s106, %s107
      %p116 = scmp.eq.s32.totalorder %s23, 0
      %p117 = por %p115, %p116
      %p118 = scmp.ne.s32.totalorder %s106, %s107
      %p119 = scmp.eq.s32.totalorder %s24, 1
      %p120 = por %p118, %p119
      %p122 = scmp.ne.s32.totalorder %s107, %s121
      %p123 = scmp.eq.s32.totalorder %s24, 0
      %p124 = por %p122, %p123
      %s126 = sadd.s32 %s125, 1
      %p129 = scmp.eq.s32.totalorder %s18, 1
      %p130 = scmp.ne.s32.totalorder %s125, %s127
      %p131 = scmp.eq.s32.totalorder %s18, 0
      %p132 = por %p130, %p131
      %p133 = scmp.ne.s32.totalorder %s125, %s127
      %p134 = scmp.eq.s32.totalorder %s23, 1
      %p135 = por %p133, %p134
      %p136 = scmp.ne.s32.totalorder %s127, %s128
      %p137 = scmp.eq.s32.totalorder %s23, 0
      %p138 = por %p136, %p137
      %p139 = scmp.ne.s32.totalorder %s127, %s128
      %p140 = scmp.eq.s32.totalorder %s24, 1
      %p141 = por %p139, %p140
      %p143 = scmp.ne.s32.totalorder %s128, %s142
      %p144 = scmp.eq.s32.totalorder %s24, 0
      %p145 = por %p143, %p144
      %s147 = sadd.s32 %s146, 1
      %p150 = scmp.eq.s32.totalorder %s18, 1
      %p151 = scmp.ne.s32.totalorder %s146, %s148
      %p152 = scmp.eq.s32.totalorder %s18, 0
      %p153 = por %p151, %p152
      %p154 = scmp.ne.s32.totalorder %s146, %s148
      %p155 = scmp.eq.s32.totalorder %s23, 1
      %p156 = por %p154, %p155
      %p157 = scmp.ne.s32.totalorder %s148, %s149
      %p158 = scmp.eq.s32.totalorder %s23, 0
      %p159 = por %p157, %p158
      %p160 = scmp.ne.s32.totalorder %s148, %s149
      %p161 = scmp.eq.s32.totalorder %s24, 1
      %p162 = por %p160, %p161
      %p164 = scmp.ne.s32.totalorder %s149, %s163
      %p165 = scmp.eq.s32.totalorder %s24, 0
      %p166 = por %p164, %p165
      %s168 = sadd.s32 %s167, 1
      %p171 = scmp.eq.s32.totalorder %s18, 1
      %p172 = scmp.ne.s32.totalorder %s167, %s169
      %p173 = scmp.eq.s32.totalorder %s18, 0
      %p174 = por %p172, %p173
      %p175 = scmp.ne.s32.totalorder %s167, %s169
      %p176 = scmp.eq.s32.totalorder %s23, 1
      %p177 = por %p175, %p176
      %p178 = scmp.ne.s32.totalorder %s169, %s170
      %p179 = scmp.eq.s32.totalorder %s23, 0
      %p180 = por %p178, %p179
      %p181 = scmp.ne.s32.totalorder %s169, %s170
      %p182 = scmp.eq.s32.totalorder %s24, 1
      %p183 = por %p181, %p182
      %p185 = scmp.ne.s32.totalorder %s170, %s184
      %p186 = scmp.eq.s32.totalorder %s24, 0
      %p187 = por %p185, %p186
      %s188 = ssub.s32 %s18, %s25
      %p189 = scmp.eq.s32.totalorder %s188, 0
      %s191 = sadd.s32 %s190, 1
      %s192 = scalar_select %p189, %s190, %s191
      %p195 = pneg %p189
      %p196 = scmp.eq.s32.totalorder %s18, 1
      %p197 = por %p195, %p196
      %p198 = scmp.ne.s32.totalorder %s190, %s193
      %p199 = scmp.eq.s32.totalorder %s18, 0
      %p200 = por %p198, %p199
      %p201 = scmp.ne.s32.totalorder %s190, %s193
      %p202 = scmp.eq.s32.totalorder %s23, 1
      %p203 = por %p201, %p202
      %p204 = scmp.ne.s32.totalorder %s193, %s194
      %p205 = scmp.eq.s32.totalorder %s23, 0
      %p206 = por %p204, %p205
      %p207 = scmp.ne.s32.totalorder %s193, %s194
      %p208 = scmp.eq.s32.totalorder %s24, 1
      %p209 = por %p207, %p208
      %p211 = scmp.ne.s32.totalorder %s194, %s210
      %p212 = scmp.eq.s32.totalorder %s24, 0
      %p213 = por %p211, %p212
      %p214 = scmp.le.s32.totalorder 1, %s18
      %p215 = scmp.lt.s32.totalorder %s18, 3
      %p216 = pnand %p214, %p215
      %p217 = pneg %p216
      // Predicated region
      $region9: #{tpu_custom_call.1} parent=5 // pred_check
        _
      $region10: #{tpu_custom_call.1} parent=5 // pred_check_branch
        %219 = sbr.rel (%p216) target = $region12
      $region11: #{tpu_custom_call.1} parent=5 // pred_region
        %s220 = ssub.s32 %s18, 1
        // Predicated region
        $region13: #{tpu_custom_call.1} parent=11 // pred_check
          %p221 = pneg %p117
        $region14: #{tpu_custom_call.1} parent=11 // pred_check_branch
          %223 = sbr.rel (%p221) target = $region16
        $region15: #{tpu_custom_call.1} parent=11 // pred_region
          %s225 = ssub.s32 128, 128
          %226 = vsyncadd [#allocation4], %s225
          %s227 = sshll.u32 [#allocation3], 4
          %s228 = int_to_ptr.vmem [resolvable:$true] %s227
          %233 = dma.hbm_to_vmem [thread:$0]  %s3, 128, %s228, [#allocation4], 64, 64, 4
        $region16: #{tpu_custom_call.1} parent=11 // pred_fallthru
          _
        // Predicated region
        $region17: #{tpu_custom_call.1} parent=11 // pred_check
          %p234 = pneg %p138
        $region18: #{tpu_custom_call.1} parent=11 // pred_check_branch
          %236 = sbr.rel (%p234) target = $region20
        $region19: #{tpu_custom_call.1} parent=11 // pred_region
          %s238 = ssub.s32 1024, 1024
          %239 = vsyncadd [#allocation7], %s238
          %s240 = sshll.u32 [#allocation6], 4
          %s241 = int_to_ptr.vmem [resolvable:$true] %s240
          %246 = dma.hbm_to_vmem [thread:$0]  %s4, 1024, %s241, [#allocation7], 64, 64, 4
        $region20: #{tpu_custom_call.1} parent=11 // pred_fallthru
          _
        // Predicated region
        $region21: #{tpu_custom_call.1} parent=11 // pred_check
          %p247 = pneg %p159
        $region22: #{tpu_custom_call.1} parent=11 // pred_check_branch
          %249 = sbr.rel (%p247) target = $region24
        $region23: #{tpu_custom_call.1} parent=11 // pred_region
          %s251 = ssub.s32 1024, 1024
          %252 = vsyncadd [#allocation7], %s251
          %s253 = sshll.u32 [#allocation8], 4
          %s254 = int_to_ptr.vmem [resolvable:$true] %s253
          %259 = dma.hbm_to_vmem [thread:$0]  %s5, 1024, %s254, [#allocation7], 64, 64, 4
        $region24: #{tpu_custom_call.1} parent=11 // pred_fallthru
          _
        // Predicated region
        $region25: #{tpu_custom_call.1} parent=11 // pred_check
          %p260 = pneg %p180
        $region26: #{tpu_custom_call.1} parent=11 // pred_check_branch
          %262 = sbr.rel (%p260) target = $region28
        $region27: #{tpu_custom_call.1} parent=11 // pred_region
          _
        $region28: #{tpu_custom_call.1} parent=11 // pred_fallthru
          _
      $region12: #{tpu_custom_call.1} parent=5 // pred_fallthru
        _
      %p263 = scmp.lt.s32.totalorder %s18, 2
      // Predicated region
      $region29: #{tpu_custom_call.1} parent=5 // pred_check
        %p264 = pneg %p263
      $region30: #{tpu_custom_call.1} parent=5 // pred_check_branch
        %266 = sbr.rel (%p264) target = $region32
      $region31: #{tpu_custom_call.1} parent=5 // pred_region
        // Predicated region
        $region33: #{tpu_custom_call.1} parent=31 // pred_check
          %p267 = pneg %p38
        $region34: #{tpu_custom_call.1} parent=31 // pred_check_branch
          %269 = sbr.rel (%p267) target = $region36
        $region35: #{tpu_custom_call.1} parent=31 // pred_region
          %s270 = smul.u32 8, %s18
          %p271 = scmp.lt.s32.totalorder %s270, 15
          %s272 = scalar_select %p271, %s270, 15
          %s273 = smul.addr %s272, 4
          %s274 = smul.addr %s273, 4
          %s275 = scalar_lea.vmem %s0, %s274
          %s276 = smul.u32 8, %s18
        $region36: #{tpu_custom_call.1} parent=31 // pred_fallthru
          _
        // Predicated region
        $region37: #{tpu_custom_call.1} parent=31 // pred_check
          %p277 = pneg %p64
        $region38: #{tpu_custom_call.1} parent=31 // pred_check_branch
          %279 = sbr.rel (%p277) target = $region40
        $region39: #{tpu_custom_call.1} parent=31 // pred_region
          %s280 = smul.u32 32, %s18
          %p281 = scmp.lt.s32.totalorder %s280, 63
          %s282 = scalar_select %p281, %s280, 63
          %s283 = smul.addr %s282, 4
          %s284 = scalar_lea.vmem %s1, %s283
          %s285 = smul.u32 32, %s18
        $region40: #{tpu_custom_call.1} parent=31 // pred_fallthru
          _
        // Predicated region
        $region41: #{tpu_custom_call.1} parent=31 // pred_check
          %p286 = pneg %p90
        $region42: #{tpu_custom_call.1} parent=31 // pred_check_branch
          %288 = sbr.rel (%p286) target = $region44
        $region43: #{tpu_custom_call.1} parent=31 // pred_region
          %p289 = scmp.lt.s32.totalorder %s18, 1
          %s290 = scalar_select %p289, %s18, 1
          %s291 = smul.addr %s290, 2
          %s292 = smul.addr %s291, 8
          %s293 = scalar_lea.vmem %s2, %s292
        $region44: #{tpu_custom_call.1} parent=31 // pred_fallthru
          _
      $region32: #{tpu_custom_call.1} parent=5 // pred_fallthru
        _
      %p294 = scmp.le.s32.totalorder 1, %s18
      %p295 = scmp.lt.s32.totalorder %s18, 3
      %p296 = pnand %p294, %p295
      %p297 = pneg %p296
      // Predicated region
      $region45: #{tpu_custom_call.1} parent=5 // pred_check
        _
      $region46: #{tpu_custom_call.1} parent=5 // pred_check_branch
        %299 = sbr.rel (%p296) target = $region48
      $region47: #{tpu_custom_call.1} parent=5 // pred_region
        %s300 = ssub.s32 %s18, 1
        // Predicated region
        $region49: #{tpu_custom_call.1} parent=47 // pred_check
          %p301 = pneg %p117
        $region50: #{tpu_custom_call.1} parent=47 // pred_check_branch
          %303 = sbr.rel (%p301) target = $region52
        $region51: #{tpu_custom_call.1} parent=47 // pred_region
          %304 = dma.done [#allocation4], 128
        $region52: #{tpu_custom_call.1} parent=47 // pred_fallthru
          _
        // Predicated region
        $region53: #{tpu_custom_call.1} parent=47 // pred_check
          %p305 = pneg %p138
        $region54: #{tpu_custom_call.1} parent=47 // pred_check_branch
          %307 = sbr.rel (%p305) target = $region56
        $region55: #{tpu_custom_call.1} parent=47 // pred_region
          %308 = dma.done [#allocation7], 1024
        $region56: #{tpu_custom_call.1} parent=47 // pred_fallthru
          _
        // Predicated region
        $region57: #{tpu_custom_call.1} parent=47 // pred_check
          %p309 = pneg %p159
        $region58: #{tpu_custom_call.1} parent=47 // pred_check_branch
          %311 = sbr.rel (%p309) target = $region60
        $region59: #{tpu_custom_call.1} parent=47 // pred_region
          %312 = dma.done [#allocation7], 1024
        $region60: #{tpu_custom_call.1} parent=47 // pred_fallthru
          _
        %s313 = smul.u32 8, %s23
        %p314 = scmp.lt.s32.totalorder %s313, 15
        %s315 = scalar_select %p314, %s313, 15
        %s316 = smul.addr %s315, 4
        %s317 = smul.addr %s316, 4
        %s318 = scalar_lea.vmem %s0, %s317
        %p319 = pneg %p44
        %p320 = pneg %p41
        %s321 = smul.u32 32, %s23
        %p322 = scmp.lt.s32.totalorder %s321, 63
        %s323 = scalar_select %p322, %s321, 63
        %s324 = smul.addr %s323, 4
        %s325 = scalar_lea.vmem %s1, %s324
        %p326 = pneg %p70
        %p327 = pneg %p67
        %p328 = scmp.lt.s32.totalorder %s23, 1
        %s329 = scalar_select %p328, %s23, 1
        %s330 = smul.addr %s329, 2
        %s331 = smul.addr %s330, 8
        %s332 = scalar_lea.vmem %s2, %s331
        %p333 = pneg %p96
        %p334 = pneg %p93
        %p335 = pneg %p117
        %p336 = pneg %p114
        %p337 = pneg %p138
        %p338 = pneg %p135
        %p339 = pneg %p159
        %p340 = pneg %p156
        %p341 = pneg %p180
        %p342 = pneg %p177
        %p343 = pneg %p206
        %p344 = pneg %p203
        %s345 = sand.u32 %s193, 1
        %s346 = scalar_lea.sflag [#allocation5], %s345
        %s347 = sand.u32 %s193, 1
        %s348 = smul.addr %s347, 8
        %s349 = scalar_lea.vmem [#allocation9], %s348
        %s350 = smul.u32 8, %s23
        %p351 = scmp.lt.s32.totalorder %s350, 15
        %s352 = scalar_select %p351, %s350, 15
        %s353 = smul.addr %s352, 4
        %s354 = smul.addr %s353, 4
        %s355 = scalar_lea.vmem %s0, %s354
        %s356 = smul.u32 8, %s23
        %s357 = smul.u32 32, %s23
        %p358 = scmp.lt.s32.totalorder %s357, 63
        %s359 = scalar_select %p358, %s357, 63
        %s360 = smul.addr %s359, 4
        %s361 = scalar_lea.vmem %s1, %s360
        %s362 = smul.u32 32, %s23
        %p363 = scmp.lt.s32.totalorder %s23, 1
        %s364 = scalar_select %p363, %s23, 1
        %s365 = smul.addr %s364, 2
        %s366 = smul.addr %s365, 8
        %s367 = scalar_lea.vmem %s2, %s366
        %v369 = vld [vmem:[%s6] sm:$0xff]
        %370 = vst [vmem:[#allocation2] sm:$0xff] 0
        %371 = vst [vmem:[#allocation2 + $0x8] sm:$0xff] 0
        %372 = vst [vmem:[#allocation2 + $0x10] sm:$0xff] 0
        %373 = vst [vmem:[#allocation2 + $0x18] sm:$0xff] 0
        %374 = vst [vmem:[#allocation2 + $0x20] sm:$0xff] 0
        %375 = vst [vmem:[#allocation2 + $0x28] sm:$0xff] 0
        %376 = vst [vmem:[#allocation2 + $0x30] sm:$0xff] 0
        %377 = vst [vmem:[#allocation2 + $0x38] sm:$0xff] 0
        %378 = vst [vmem:[#allocation2 + $0x40] sm:$0xff] 0
        %379 = vst [vmem:[#allocation2 + $0x48] sm:$0xff] 0
        %380 = vst [vmem:[#allocation2 + $0x50] sm:$0xff] 0
        %381 = vst [vmem:[#allocation2 + $0x58] sm:$0xff] 0
        %382 = vst [vmem:[#allocation2 + $0x60] sm:$0xff] 0
        %383 = vst [vmem:[#allocation2 + $0x68] sm:$0xff] 0
        %384 = vst [vmem:[#allocation2 + $0x70] sm:$0xff] 0
        %385 = vst [vmem:[#allocation2 + $0x78] sm:$0xff] 0
        %386 = vst [vmem:[#allocation2 + $0x80] sm:$0xff] 0
        %387 = vst [vmem:[#allocation2 + $0x88] sm:$0xff] 0
        %388 = vst [vmem:[#allocation2 + $0x90] sm:$0xff] 0
        %389 = vst [vmem:[#allocation2 + $0x98] sm:$0xff] 0
        %390 = vst [vmem:[#allocation2 + $0xa0] sm:$0xff] 0
        %391 = vst [vmem:[#allocation2 + $0xa8] sm:$0xff] 0
        %392 = vst [vmem:[#allocation2 + $0xb0] sm:$0xff] 0
        %393 = vst [vmem:[#allocation2 + $0xb8] sm:$0xff] 0
        %394 = vst [vmem:[#allocation2 + $0xc0] sm:$0xff] 0
        %395 = vst [vmem:[#allocation2 + $0xc8] sm:$0xff] 0
        %396 = vst [vmem:[#allocation2 + $0xd0] sm:$0xff] 0
        %397 = vst [vmem:[#allocation2 + $0xd8] sm:$0xff] 0
        %398 = vst [vmem:[#allocation2 + $0xe0] sm:$0xff] 0
        %399 = vst [vmem:[#allocation2 + $0xe8] sm:$0xff] 0
        %400 = vst [vmem:[#allocation2 + $0xf0] sm:$0xff] 0
        %401 = vst [vmem:[#allocation2 + $0xf8] sm:$0xff] 0
        %v402 = vld [vmem:[%s355] sm:$0xf]
        %v403 = vld [vmem:[%s355 + $0x4] sm:$0xf]
        %v404 = vld [vmem:[%s355 + $0x8] sm:$0xf]
        %v405 = vld [vmem:[%s355 + $0xc] sm:$0xf]
        %vm406 = vcmask 257024
        %407 = vst.msk [vmem:[#allocation2] sm:$0xf] %vm406, %v402
        %408 = vst.msk [vmem:[#allocation2 + $0x8] sm:$0xf] %vm406, %v403
        %409 = vst.msk [vmem:[#allocation2 + $0x10] sm:$0xf] %vm406, %v404
        %410 = vst.msk [vmem:[#allocation2 + $0x18] sm:$0xf] %vm406, %v405
        %s411 = scalar_lea.vmem %s355, 16
        %v412 = vld [vmem:[%s411] sm:$0xf]
        %v413 = vld [vmem:[%s411 + $0x4] sm:$0xf]
        %v414 = vld [vmem:[%s411 + $0x8] sm:$0xf]
        %v415 = vld [vmem:[%s411 + $0xc] sm:$0xf]
        %420 = vrot.lane.b32.xlu0 %v412, 32
        %v421 = vpop.permute.xlu0 %420
        %422 = vrot.lane.b32.xlu0 %v413, 32
        %v423 = vpop.permute.xlu0 %422
        %424 = vrot.lane.b32.xlu0 %v414, 32
        %v425 = vpop.permute.xlu0 %424
        %426 = vrot.lane.b32.xlu0 %v415, 32
        %v427 = vpop.permute.xlu0 %426
        %vm432 = vcmask 519424
        %433 = vst.msk [vmem:[#allocation2 + $0x20] sm:$0xf] %vm432, %v421
        %434 = vst.msk [vmem:[#allocation2 + $0x28] sm:$0xf] %vm432, %v423
        %435 = vst.msk [vmem:[#allocation2 + $0x30] sm:$0xf] %vm432, %v425
        %436 = vst.msk [vmem:[#allocation2 + $0x38] sm:$0xf] %vm432, %v427
        %s437 = scalar_lea.vmem %s355, 32
        %v438 = vld [vmem:[%s437] sm:$0xf]
        %v439 = vld [vmem:[%s437 + $0x4] sm:$0xf]
        %v440 = vld [vmem:[%s437 + $0x8] sm:$0xf]
        %v441 = vld [vmem:[%s437 + $0xc] sm:$0xf]
        %446 = vrot.lane.b32.xlu0 %v438, 64
        %v447 = vpop.permute.xlu0 %446
        %448 = vrot.lane.b32.xlu0 %v439, 64
        %v449 = vpop.permute.xlu0 %448
        %450 = vrot.lane.b32.xlu0 %v440, 64
        %v451 = vpop.permute.xlu0 %450
        %452 = vrot.lane.b32.xlu0 %v441, 64
        %v453 = vpop.permute.xlu0 %452
        %vm458 = vcmask 781824
        %459 = vst.msk [vmem:[#allocation2 + $0x40] sm:$0xf] %vm458, %v447
        %460 = vst.msk [vmem:[#allocation2 + $0x48] sm:$0xf] %vm458, %v449
        %461 = vst.msk [vmem:[#allocation2 + $0x50] sm:$0xf] %vm458, %v451
        %462 = vst.msk [vmem:[#allocation2 + $0x58] sm:$0xf] %vm458, %v453
        %s463 = scalar_lea.vmem %s355, 48
        %v464 = vld [vmem:[%s463] sm:$0xf]
        %v465 = vld [vmem:[%s463 + $0x4] sm:$0xf]
        %v466 = vld [vmem:[%s463 + $0x8] sm:$0xf]
        %v467 = vld [vmem:[%s463 + $0xc] sm:$0xf]
        %472 = vrot.lane.b32.xlu0 %v464, 96
        %v473 = vpop.permute.xlu0 %472
        %474 = vrot.lane.b32.xlu0 %v465, 96
        %v475 = vpop.permute.xlu0 %474
        %476 = vrot.lane.b32.xlu0 %v466, 96
        %v477 = vpop.permute.xlu0 %476
        %478 = vrot.lane.b32.xlu0 %v467, 96
        %v479 = vpop.permute.xlu0 %478
        %vm484 = vcmask 1044224
        %485 = vst.msk [vmem:[#allocation2 + $0x60] sm:$0xf] %vm484, %v473
        %486 = vst.msk [vmem:[#allocation2 + $0x68] sm:$0xf] %vm484, %v475
        %487 = vst.msk [vmem:[#allocation2 + $0x70] sm:$0xf] %vm484, %v477
        %488 = vst.msk [vmem:[#allocation2 + $0x78] sm:$0xf] %vm484, %v479
        %s489 = scalar_lea.vmem %s355, 64
        %v490 = vld [vmem:[%s489] sm:$0xf]
        %v491 = vld [vmem:[%s489 + $0x4] sm:$0xf]
        %v492 = vld [vmem:[%s489 + $0x8] sm:$0xf]
        %v493 = vld [vmem:[%s489 + $0xc] sm:$0xf]
        %494 = vst.msk [vmem:[#allocation2 + $0x84] sm:$0xf] %vm406, %v490
        %495 = vst.msk [vmem:[#allocation2 + $0x8c] sm:$0xf] %vm406, %v491
        %496 = vst.msk [vmem:[#allocation2 + $0x94] sm:$0xf] %vm406, %v492
        %497 = vst.msk [vmem:[#allocation2 + $0x9c] sm:$0xf] %vm406, %v493
        %s498 = scalar_lea.vmem %s355, 80
        %v499 = vld [vmem:[%s498] sm:$0xf]
        %v500 = vld [vmem:[%s498 + $0x4] sm:$0xf]
        %v501 = vld [vmem:[%s498 + $0x8] sm:$0xf]
        %v502 = vld [vmem:[%s498 + $0xc] sm:$0xf]
        %507 = vrot.lane.b32.xlu0 %v499, 32
        %v508 = vpop.permute.xlu0 %507
        %509 = vrot.lane.b32.xlu0 %v500, 32
        %v510 = vpop.permute.xlu0 %509
        %511 = vrot.lane.b32.xlu0 %v501, 32
        %v512 = vpop.permute.xlu0 %511
        %513 = vrot.lane.b32.xlu0 %v502, 32
        %v514 = vpop.permute.xlu0 %513
        %519 = vst.msk [vmem:[#allocation2 + $0xa4] sm:$0xf] %vm432, %v508
        %520 = vst.msk [vmem:[#allocation2 + $0xac] sm:$0xf] %vm432, %v510
        %521 = vst.msk [vmem:[#allocation2 + $0xb4] sm:$0xf] %vm432, %v512
        %522 = vst.msk [vmem:[#allocation2 + $0xbc] sm:$0xf] %vm432, %v514
        %s523 = scalar_lea.vmem %s355, 96
        %v524 = vld [vmem:[%s523] sm:$0xf]
        %v525 = vld [vmem:[%s523 + $0x4] sm:$0xf]
        %v526 = vld [vmem:[%s523 + $0x8] sm:$0xf]
        %v527 = vld [vmem:[%s523 + $0xc] sm:$0xf]
        %532 = vrot.lane.b32.xlu0 %v524, 64
        %v533 = vpop.permute.xlu0 %532
        %534 = vrot.lane.b32.xlu0 %v525, 64
        %v535 = vpop.permute.xlu0 %534
        %536 = vrot.lane.b32.xlu0 %v526, 64
        %v537 = vpop.permute.xlu0 %536
        %538 = vrot.lane.b32.xlu0 %v527, 64
        %v539 = vpop.permute.xlu0 %538
        %544 = vst.msk [vmem:[#allocation2 + $0xc4] sm:$0xf] %vm458, %v533
        %545 = vst.msk [vmem:[#allocation2 + $0xcc] sm:$0xf] %vm458, %v535
        %546 = vst.msk [vmem:[#allocation2 + $0xd4] sm:$0xf] %vm458, %v537
        %547 = vst.msk [vmem:[#allocation2 + $0xdc] sm:$0xf] %vm458, %v539
        %s548 = scalar_lea.vmem %s355, 112
        %v549 = vld [vmem:[%s548] sm:$0xf]
        %v550 = vld [vmem:[%s548 + $0x4] sm:$0xf]
        %v551 = vld [vmem:[%s548 + $0x8] sm:$0xf]
        %v552 = vld [vmem:[%s548 + $0xc] sm:$0xf]
        %557 = vrot.lane.b32.xlu0 %v549, 96
        %v558 = vpop.permute.xlu0 %557
        %559 = vrot.lane.b32.xlu0 %v550, 96
        %v560 = vpop.permute.xlu0 %559
        %561 = vrot.lane.b32.xlu0 %v551, 96
        %v562 = vpop.permute.xlu0 %561
        %563 = vrot.lane.b32.xlu0 %v552, 96
        %v564 = vpop.permute.xlu0 %563
        %569 = vst.msk [vmem:[#allocation2 + $0xe4] sm:$0xf] %vm484, %v558
        %570 = vst.msk [vmem:[#allocation2 + $0xec] sm:$0xf] %vm484, %v560
        %571 = vst.msk [vmem:[#allocation2 + $0xf4] sm:$0xf] %vm484, %v562
        %572 = vst.msk [vmem:[#allocation2 + $0xfc] sm:$0xf] %vm484, %v564
        %v573 = vld [vmem:[#allocation2] sm:$0xff]
        %v574 = vld [vmem:[#allocation2 + $0x8] sm:$0xff]
        %v575 = vld [vmem:[#allocation2 + $0x10] sm:$0xff]
        %v576 = vld [vmem:[#allocation2 + $0x18] sm:$0xff]
        %v577 = vld [vmem:[#allocation2 + $0x20] sm:$0xff]
        %v578 = vld [vmem:[#allocation2 + $0x28] sm:$0xff]
        %v579 = vld [vmem:[#allocation2 + $0x30] sm:$0xff]
        %v580 = vld [vmem:[#allocation2 + $0x38] sm:$0xff]
        %v581 = vld [vmem:[#allocation2 + $0x40] sm:$0xff]
        %v582 = vld [vmem:[#allocation2 + $0x48] sm:$0xff]
        %v583 = vld [vmem:[#allocation2 + $0x50] sm:$0xff]
        %v584 = vld [vmem:[#allocation2 + $0x58] sm:$0xff]
        %v585 = vld [vmem:[#allocation2 + $0x60] sm:$0xff]
        %v586 = vld [vmem:[#allocation2 + $0x68] sm:$0xff]
        %v587 = vld [vmem:[#allocation2 + $0x70] sm:$0xff]
        %v588 = vld [vmem:[#allocation2 + $0x78] sm:$0xff]
        %v589 = vld [vmem:[#allocation2 + $0x80] sm:$0xff]
        %v590 = vld [vmem:[#allocation2 + $0x88] sm:$0xff]
        %v591 = vld [vmem:[#allocation2 + $0x90] sm:$0xff]
        %v592 = vld [vmem:[#allocation2 + $0x98] sm:$0xff]
        %v593 = vld [vmem:[#allocation2 + $0xa0] sm:$0xff]
        %v594 = vld [vmem:[#allocation2 + $0xa8] sm:$0xff]
        %v595 = vld [vmem:[#allocation2 + $0xb0] sm:$0xff]
        %v596 = vld [vmem:[#allocation2 + $0xb8] sm:$0xff]
        %v597 = vld [vmem:[#allocation2 + $0xc0] sm:$0xff]
        %v598 = vld [vmem:[#allocation2 + $0xc8] sm:$0xff]
        %v599 = vld [vmem:[#allocation2 + $0xd0] sm:$0xff]
        %v600 = vld [vmem:[#allocation2 + $0xd8] sm:$0xff]
        %v601 = vld [vmem:[#allocation2 + $0xe0] sm:$0xff]
        %v602 = vld [vmem:[#allocation2 + $0xe8] sm:$0xff]
        %v603 = vld [vmem:[#allocation2 + $0xf0] sm:$0xff]
        %v604 = vld [vmem:[#allocation2 + $0xf8] sm:$0xff]
        %v605 = vld [vmem:[%s361] sm:$0xf]
        %v606 = vld [vmem:[%s361 + $0x4] sm:$0xf]
        %v607 = vld [vmem:[%s361 + $0x8] sm:$0xf]
        %v608 = vld [vmem:[%s361 + $0xc] sm:$0xf]
        %v609 = vld [vmem:[%s361 + $0x10] sm:$0xf]
        %v610 = vld [vmem:[%s361 + $0x14] sm:$0xf]
        %v611 = vld [vmem:[%s361 + $0x18] sm:$0xf]
        %v612 = vld [vmem:[%s361 + $0x1c] sm:$0xf]
        %v613 = vld [vmem:[%s361 + $0x20] sm:$0xf]
        %v614 = vld [vmem:[%s361 + $0x24] sm:$0xf]
        %v615 = vld [vmem:[%s361 + $0x28] sm:$0xf]
        %v616 = vld [vmem:[%s361 + $0x2c] sm:$0xf]
        %v617 = vld [vmem:[%s361 + $0x30] sm:$0xf]
        %v618 = vld [vmem:[%s361 + $0x34] sm:$0xf]
        %v619 = vld [vmem:[%s361 + $0x38] sm:$0xf]
        %v620 = vld [vmem:[%s361 + $0x3c] sm:$0xf]
        %v621 = vld [vmem:[%s361 + $0x40] sm:$0xf]
        %v622 = vld [vmem:[%s361 + $0x44] sm:$0xf]
        %v623 = vld [vmem:[%s361 + $0x48] sm:$0xf]
        %v624 = vld [vmem:[%s361 + $0x4c] sm:$0xf]
        %v625 = vld [vmem:[%s361 + $0x50] sm:$0xf]
        %v626 = vld [vmem:[%s361 + $0x54] sm:$0xf]
        %v627 = vld [vmem:[%s361 + $0x58] sm:$0xf]
        %v628 = vld [vmem:[%s361 + $0x5c] sm:$0xf]
        %v629 = vld [vmem:[%s361 + $0x60] sm:$0xf]
        %v630 = vld [vmem:[%s361 + $0x64] sm:$0xf]
        %v631 = vld [vmem:[%s361 + $0x68] sm:$0xf]
        %v632 = vld [vmem:[%s361 + $0x6c] sm:$0xf]
        %v633 = vld [vmem:[%s361 + $0x70] sm:$0xf]
        %v634 = vld [vmem:[%s361 + $0x74] sm:$0xf]
        %v635 = vld [vmem:[%s361 + $0x78] sm:$0xf]
        %v636 = vld [vmem:[%s361 + $0x7c] sm:$0xf]
        %v637 = vld [vmem:[#allocation3] sm:$0xf]
        %v638 = vld [vmem:[#allocation3 + $0x4] sm:$0xf]
        %v671 = vunpack.c.l.b16 %v605
        %v672 = vunpack.c.l.b16 %v606
        %v673 = vunpack.c.l.b16 %v607
        %v674 = vunpack.c.l.b16 %v608
        %v675 = vunpack.c.l.b16 %v609
        %v676 = vunpack.c.l.b16 %v610
        %v677 = vunpack.c.l.b16 %v611
        %v678 = vunpack.c.l.b16 %v612
        %v679 = vunpack.c.l.b16 %v613
        %v680 = vunpack.c.l.b16 %v614
        %v681 = vunpack.c.l.b16 %v615
        %v682 = vunpack.c.l.b16 %v616
        %v683 = vunpack.c.l.b16 %v617
        %v684 = vunpack.c.l.b16 %v618
        %v685 = vunpack.c.l.b16 %v619
        %v686 = vunpack.c.l.b16 %v620
        %v687 = vunpack.c.l.b16 %v621
        %v688 = vunpack.c.l.b16 %v622
        %v689 = vunpack.c.l.b16 %v623
        %v690 = vunpack.c.l.b16 %v624
        %v691 = vunpack.c.l.b16 %v625
        %v692 = vunpack.c.l.b16 %v626
        %v693 = vunpack.c.l.b16 %v627
        %v694 = vunpack.c.l.b16 %v628
        %v695 = vunpack.c.l.b16 %v629
        %v696 = vunpack.c.l.b16 %v630
        %v697 = vunpack.c.l.b16 %v631
        %v698 = vunpack.c.l.b16 %v632
        %v699 = vunpack.c.l.b16 %v633
        %v700 = vunpack.c.l.b16 %v634
        %v701 = vunpack.c.l.b16 %v635
        %v702 = vunpack.c.l.b16 %v636
        %v703 = vpack.c.b16 %v672, %v671
        %v704 = vpack.c.b16 %v674, %v673
        %v705 = vpack.c.b16 %v676, %v675
        %v706 = vpack.c.b16 %v678, %v677
        %v707 = vpack.c.b16 %v680, %v679
        %v708 = vpack.c.b16 %v682, %v681
        %v709 = vpack.c.b16 %v684, %v683
        %v710 = vpack.c.b16 %v686, %v685
        %v711 = vpack.c.b16 %v688, %v687
        %v712 = vpack.c.b16 %v690, %v689
        %v713 = vpack.c.b16 %v692, %v691
        %v714 = vpack.c.b16 %v694, %v693
        %v715 = vpack.c.b16 %v696, %v695
        %v716 = vpack.c.b16 %v698, %v697
        %v717 = vpack.c.b16 %v700, %v699
        %v718 = vpack.c.b16 %v702, %v701
        %v721 = vunpack.c.l.b16 %v637
        %v722 = vunpack.c.l.b16 %v638
        %v723 = vpack.c.b16 %v722, %v721
        %vm725 = vcmask 130048
        %v727 = vsel %vm725, %v703, 0
        %v730 = vsel %vm725, %v704, 0
        %v733 = vsel %vm725, %v705, 0
        %v736 = vsel %vm725, %v706, 0
        %v739 = vsel %vm725, %v707, 0
        %v742 = vsel %vm725, %v708, 0
        %v745 = vsel %vm725, %v709, 0
        %v748 = vsel %vm725, %v710, 0
        %v751 = vsel %vm725, %v711, 0
        %v754 = vsel %vm725, %v712, 0
        %v757 = vsel %vm725, %v713, 0
        %v760 = vsel %vm725, %v714, 0
        %v763 = vsel %vm725, %v715, 0
        %v766 = vsel %vm725, %v716, 0
        %v769 = vsel %vm725, %v717, 0
        %v772 = vsel %vm725, %v718, 0
        %774 = vmatprep.subr.bf16.mxu0 0
        %775 = vmatpush1.bf16.msra.mxu0 0
        %776 = vmatprep.subr.bf16.mxu0 0
        %777 = vmatpush1.bf16.msra.mxu0 0
        %778 = vmatprep.subr.bf16.mxu0 0
        %779 = vmatpush1.bf16.msra.mxu0 0
        %780 = vmatprep.subr.bf16.mxu0 0
        %781 = vmatpush1.bf16.msra.mxu0 0
        %782 = vmatprep.subr.bf16.mxu0 0
        %783 = vmatpush1.bf16.msra.mxu0 0
        %784 = vmatprep.subr.bf16.mxu0 0
        %785 = vmatpush1.bf16.msra.mxu0 0
        %786 = vmatprep.subr.bf16.mxu0 0
        %787 = vmatpush1.bf16.msra.mxu0 0
        %788 = vmatprep.subr.bf16.mxu0 0
        %789 = vmatpush1.bf16.msra.mxu0 %v723
        %790 = vmatprep.subr.bf16.mxu0 0
        %791 = vmatpush2.bf16.msra.mxu0 0
        %792 = vmatprep.subr.bf16.mxu0 0
        %793 = vmatpush2.bf16.msra.mxu0 0
        %794 = vmatprep.subr.bf16.mxu0 0
        %795 = vmatpush2.bf16.msra.mxu0 0
        %796 = vmatprep.subr.bf16.mxu0 0
        %797 = vmatpush2.bf16.msra.mxu0 0
        %798 = vmatprep.subr.bf16.mxu0 0
        %799 = vmatpush2.bf16.msra.mxu0 0
        %800 = vmatprep.subr.bf16.mxu0 0
        %801 = vmatpush2.bf16.msra.mxu0 0
        %802 = vmatprep.subr.bf16.mxu0 0
        %803 = vmatpush2.bf16.msra.mxu0 0
        %804 = vmatprep.subr.bf16.mxu0 0
        %805 = vmatpush2.bf16.msra.mxu0 0
        %806 = vmatprep.mubr.bf16.mxu0 0
        %807 = vmatmul.mubr.bf16.gmra.mxu0 %v727
        %v808 = vpop.f32.mrf.mxu0
        %v809 = vadd.f32 0.0, %v808
        %v810 = vpop.f32.mrf.mxu0
        %v811 = vpop.f32.mrf.mxu0
        %v812 = vadd.f32 0.0, %v811
        %v813 = vpop.f32.mrf.mxu0
        %814 = vmatprep.mubr.bf16.mxu0 0
        %815 = vmatmul.mubr.bf16.gmra.mxu0 %v730
        %v816 = vpop.f32.mrf.mxu0
        %v817 = vadd.f32 0.0, %v816
        %v818 = vpop.f32.mrf.mxu0
        %v819 = vpop.f32.mrf.mxu0
        %v820 = vadd.f32 0.0, %v819
        %v821 = vpop.f32.mrf.mxu0
        %822 = vmatprep.mubr.bf16.mxu0 0
        %823 = vmatmul.mubr.bf16.gmra.mxu0 %v733
        %v824 = vpop.f32.mrf.mxu0
        %v825 = vadd.f32 0.0, %v824
        %v826 = vpop.f32.mrf.mxu0
        %v827 = vpop.f32.mrf.mxu0
        %v828 = vadd.f32 0.0, %v827
        %v829 = vpop.f32.mrf.mxu0
        %830 = vmatprep.mubr.bf16.mxu0 0
        %831 = vmatmul.mubr.bf16.gmra.mxu0 %v736
        %v832 = vpop.f32.mrf.mxu0
        %v833 = vadd.f32 0.0, %v832
        %v834 = vpop.f32.mrf.mxu0
        %v835 = vpop.f32.mrf.mxu0
        %v836 = vadd.f32 0.0, %v835
        %v837 = vpop.f32.mrf.mxu0
        %838 = vmatprep.mubr.bf16.mxu0 0
        %839 = vmatmul.mubr.bf16.gmra.mxu0 %v739
        %v840 = vpop.f32.mrf.mxu0
        %v841 = vadd.f32 0.0, %v840
        %v842 = vpop.f32.mrf.mxu0
        %v843 = vpop.f32.mrf.mxu0
        %v844 = vadd.f32 0.0, %v843
        %v845 = vpop.f32.mrf.mxu0
        %846 = vmatprep.mubr.bf16.mxu0 0
        %847 = vmatmul.mubr.bf16.gmra.mxu0 %v742
        %v848 = vpop.f32.mrf.mxu0
        %v849 = vadd.f32 0.0, %v848
        %v850 = vpop.f32.mrf.mxu0
        %v851 = vpop.f32.mrf.mxu0
        %v852 = vadd.f32 0.0, %v851
        %v853 = vpop.f32.mrf.mxu0
        %854 = vmatprep.mubr.bf16.mxu0 0
        %855 = vmatmul.mubr.bf16.gmra.mxu0 %v745
        %v856 = vpop.f32.mrf.mxu0
        %v857 = vadd.f32 0.0, %v856
        %v858 = vpop.f32.mrf.mxu0
        %v859 = vpop.f32.mrf.mxu0
        %v860 = vadd.f32 0.0, %v859
        %v861 = vpop.f32.mrf.mxu0
        %862 = vmatprep.mubr.bf16.mxu0 0
        %863 = vmatmul.mubr.bf16.gmra.mxu0 %v748
        %v864 = vpop.f32.mrf.mxu0
        %v865 = vadd.f32 0.0, %v864
        %v866 = vpop.f32.mrf.mxu0
        %v867 = vpop.f32.mrf.mxu0
        %v868 = vadd.f32 0.0, %v867
        %v869 = vpop.f32.mrf.mxu0
        %870 = vmatprep.mubr.bf16.mxu0 0
        %871 = vmatmul.mubr.bf16.gmra.mxu0 %v751
        %v872 = vpop.f32.mrf.mxu0
        %v873 = vadd.f32 0.0, %v872
        %v874 = vpop.f32.mrf.mxu0
        %v875 = vpop.f32.mrf.mxu0
        %v876 = vadd.f32 0.0, %v875
        %v877 = vpop.f32.mrf.mxu0
        %878 = vmatprep.mubr.bf16.mxu0 0
        %879 = vmatmul.mubr.bf16.gmra.mxu0 %v754
        %v880 = vpop.f32.mrf.mxu0
        %v881 = vadd.f32 0.0, %v880
        %v882 = vpop.f32.mrf.mxu0
        %v883 = vpop.f32.mrf.mxu0
        %v884 = vadd.f32 0.0, %v883
        %v885 = vpop.f32.mrf.mxu0
        %886 = vmatprep.mubr.bf16.mxu0 0
        %887 = vmatmul.mubr.bf16.gmra.mxu0 %v757
        %v888 = vpop.f32.mrf.mxu0
        %v889 = vadd.f32 0.0, %v888
        %v890 = vpop.f32.mrf.mxu0
        %v891 = vpop.f32.mrf.mxu0
        %v892 = vadd.f32 0.0, %v891
        %v893 = vpop.f32.mrf.mxu0
        %894 = vmatprep.mubr.bf16.mxu0 0
        %895 = vmatmul.mubr.bf16.gmra.mxu0 %v760
        %v896 = vpop.f32.mrf.mxu0
        %v897 = vadd.f32 0.0, %v896
        %v898 = vpop.f32.mrf.mxu0
        %v899 = vpop.f32.mrf.mxu0
        %v900 = vadd.f32 0.0, %v899
        %v901 = vpop.f32.mrf.mxu0
        %902 = vmatprep.mubr.bf16.mxu0 0
        %903 = vmatmul.mubr.bf16.gmra.mxu0 %v763
        %v904 = vpop.f32.mrf.mxu0
        %v905 = vadd.f32 0.0, %v904
        %v906 = vpop.f32.mrf.mxu0
        %v907 = vpop.f32.mrf.mxu0
        %v908 = vadd.f32 0.0, %v907
        %v909 = vpop.f32.mrf.mxu0
        %910 = vmatprep.mubr.bf16.mxu0 0
        %911 = vmatmul.mubr.bf16.gmra.mxu0 %v766
        %v912 = vpop.f32.mrf.mxu0
        %v913 = vadd.f32 0.0, %v912
        %v914 = vpop.f32.mrf.mxu0
        %v915 = vpop.f32.mrf.mxu0
        %v916 = vadd.f32 0.0, %v915
        %v917 = vpop.f32.mrf.mxu0
        %918 = vmatprep.mubr.bf16.mxu0 0
        %919 = vmatmul.mubr.bf16.gmra.mxu0 %v769
        %v920 = vpop.f32.mrf.mxu0
        %v921 = vadd.f32 0.0, %v920
        %v922 = vpop.f32.mrf.mxu0
        %v923 = vpop.f32.mrf.mxu0
        %v924 = vadd.f32 0.0, %v923
        %v925 = vpop.f32.mrf.mxu0
        %926 = vmatprep.mubr.bf16.mxu0 0
        %927 = vmatmul.mubr.bf16.gmra.mxu0 %v772
        %v928 = vpop.f32.mrf.mxu0
        %v929 = vadd.f32 0.0, %v928
        %v930 = vpop.f32.mrf.mxu0
        %v931 = vpop.f32.mrf.mxu0
        %v932 = vadd.f32 0.0, %v931
        %v933 = vpop.f32.mrf.mxu0
        %934 = vdwg.mxu0
        %v935 = vpack.c.bf16 %v812, %v809
        %v936 = vpack.c.bf16 %v820, %v817
        %v937 = vpack.c.bf16 %v828, %v825
        %v938 = vpack.c.bf16 %v836, %v833
        %v939 = vpack.c.bf16 %v844, %v841
        %v940 = vpack.c.bf16 %v852, %v849
        %v941 = vpack.c.bf16 %v860, %v857
        %v942 = vpack.c.bf16 %v868, %v865
        %v943 = vpack.c.bf16 %v876, %v873
        %v944 = vpack.c.bf16 %v884, %v881
        %v945 = vpack.c.bf16 %v892, %v889
        %v946 = vpack.c.bf16 %v900, %v897
        %v947 = vpack.c.bf16 %v908, %v905
        %v948 = vpack.c.bf16 %v916, %v913
        %v949 = vpack.c.bf16 %v924, %v921
        %v950 = vpack.c.bf16 %v932, %v929
        %v951 = vlaneseq
        %v952 = vshrl.u32 %v951, 7
        %v953 = vsub.s32 0, %v952
        %v954 = vrot.slane %v369, %v953
        %v987 = vunpack.c.l.b16 %v573
        %v988 = vunpack.c.h.b16 %v573
        %v989 = vunpack.c.l.b16 %v574
        %v990 = vunpack.c.h.b16 %v574
        %v991 = vunpack.c.l.b16 %v575
        %v992 = vunpack.c.h.b16 %v575
        %v993 = vunpack.c.l.b16 %v576
        %v994 = vunpack.c.h.b16 %v576
        %v995 = vunpack.c.l.b16 %v577
        %v996 = vunpack.c.h.b16 %v577
        %v997 = vunpack.c.l.b16 %v578
        %v998 = vunpack.c.h.b16 %v578
        %v999 = vunpack.c.l.b16 %v579
        %v1000 = vunpack.c.h.b16 %v579
        %v1001 = vunpack.c.l.b16 %v580
        %v1002 = vunpack.c.h.b16 %v580
        %v1003 = vunpack.c.l.b16 %v581
        %v1004 = vunpack.c.h.b16 %v581
        %v1005 = vunpack.c.l.b16 %v582
        %v1006 = vunpack.c.h.b16 %v582
        %v1007 = vunpack.c.l.b16 %v583
        %v1008 = vunpack.c.h.b16 %v583
        %v1009 = vunpack.c.l.b16 %v584
        %v1010 = vunpack.c.h.b16 %v584
        %v1011 = vunpack.c.l.b16 %v585
        %v1012 = vunpack.c.h.b16 %v585
        %v1013 = vunpack.c.l.b16 %v586
        %v1014 = vunpack.c.h.b16 %v586
        %v1015 = vunpack.c.l.b16 %v587
        %v1016 = vunpack.c.h.b16 %v587
        %v1017 = vunpack.c.l.b16 %v588
        %v1018 = vunpack.c.h.b16 %v588
        %v1019 = vunpack.c.l.b16 %v589
        %v1020 = vunpack.c.h.b16 %v589
        %v1021 = vunpack.c.l.b16 %v590
        %v1022 = vunpack.c.h.b16 %v590
        %v1023 = vunpack.c.l.b16 %v591
        %v1024 = vunpack.c.h.b16 %v591
        %v1025 = vunpack.c.l.b16 %v592
        %v1026 = vunpack.c.h.b16 %v592
        %v1027 = vunpack.c.l.b16 %v593
        %v1028 = vunpack.c.h.b16 %v593
        %v1029 = vunpack.c.l.b16 %v594
        %v1030 = vunpack.c.h.b16 %v594
        %v1031 = vunpack.c.l.b16 %v595
        %v1032 = vunpack.c.h.b16 %v595
        %v1033 = vunpack.c.l.b16 %v596
        %v1034 = vunpack.c.h.b16 %v596
        %v1035 = vunpack.c.l.b16 %v597
        %v1036 = vunpack.c.h.b16 %v597
        %v1037 = vunpack.c.l.b16 %v598
        %v1038 = vunpack.c.h.b16 %v598
        %v1039 = vunpack.c.l.b16 %v599
        %v1040 = vunpack.c.h.b16 %v599
        %v1041 = vunpack.c.l.b16 %v600
        %v1042 = vunpack.c.h.b16 %v600
        %v1043 = vunpack.c.l.b16 %v601
        %v1044 = vunpack.c.h.b16 %v601
        %v1045 = vunpack.c.l.b16 %v602
        %v1046 = vunpack.c.h.b16 %v602
        %v1047 = vunpack.c.l.b16 %v603
        %v1048 = vunpack.c.h.b16 %v603
        %v1049 = vunpack.c.l.b16 %v604
        %v1050 = vunpack.c.h.b16 %v604
        %v1051 = vpack.c.b16 %v989, %v987
        %v1052 = vpack.c.b16 %v990, %v988
        %v1053 = vpack.c.b16 %v993, %v991
        %v1054 = vpack.c.b16 %v994, %v992
        %v1055 = vpack.c.b16 %v997, %v995
        %v1056 = vpack.c.b16 %v998, %v996
        %v1057 = vpack.c.b16 %v1001, %v999
        %v1058 = vpack.c.b16 %v1002, %v1000
        %v1059 = vpack.c.b16 %v1005, %v1003
        %v1060 = vpack.c.b16 %v1006, %v1004
        %v1061 = vpack.c.b16 %v1009, %v1007
        %v1062 = vpack.c.b16 %v1010, %v1008
        %v1063 = vpack.c.b16 %v1013, %v1011
        %v1064 = vpack.c.b16 %v1014, %v1012
        %v1065 = vpack.c.b16 %v1017, %v1015
        %v1066 = vpack.c.b16 %v1018, %v1016
        %v1067 = vpack.c.b16 %v1021, %v1019
        %v1068 = vpack.c.b16 %v1022, %v1020
        %v1069 = vpack.c.b16 %v1025, %v1023
        %v1070 = vpack.c.b16 %v1026, %v1024
        %v1071 = vpack.c.b16 %v1029, %v1027
        %v1072 = vpack.c.b16 %v1030, %v1028
        %v1073 = vpack.c.b16 %v1033, %v1031
        %v1074 = vpack.c.b16 %v1034, %v1032
        %v1075 = vpack.c.b16 %v1037, %v1035
        %v1076 = vpack.c.b16 %v1038, %v1036
        %v1077 = vpack.c.b16 %v1041, %v1039
        %v1078 = vpack.c.b16 %v1042, %v1040
        %v1079 = vpack.c.b16 %v1045, %v1043
        %v1080 = vpack.c.b16 %v1046, %v1044
        %v1081 = vpack.c.b16 %v1049, %v1047
        %v1082 = vpack.c.b16 %v1050, %v1048
        %1115 = vmatprep.subr.bf16.mxu0 0
        %1116 = vmatpush1.bf16.msra.mxu0 %v942
        %1117 = vmatprep.subr.bf16.mxu0 0
        %1118 = vmatpush1.bf16.msra.mxu0 %v941
        %1119 = vmatprep.subr.bf16.mxu0 0
        %1120 = vmatpush1.bf16.msra.mxu0 %v940
        %1121 = vmatprep.subr.bf16.mxu0 0
        %1122 = vmatpush1.bf16.msra.mxu0 %v939
        %1123 = vmatprep.subr.bf16.mxu0 0
        %1124 = vmatpush1.bf16.msra.mxu0 %v938
        %1125 = vmatprep.subr.bf16.mxu0 0
        %1126 = vmatpush1.bf16.msra.mxu0 %v937
        %1127 = vmatprep.subr.bf16.mxu0 0
        %1128 = vmatpush1.bf16.msra.mxu0 %v936
        %1129 = vmatprep.subr.bf16.mxu0 0
        %1130 = vmatpush1.bf16.msra.mxu0 %v935
        %1131 = vmatprep.subr.bf16.mxu0 0
        %1132 = vmatpush2.bf16.msra.mxu0 %v950
        %1133 = vmatprep.subr.bf16.mxu0 0
        %1134 = vmatpush2.bf16.msra.mxu0 %v949
        %1135 = vmatprep.subr.bf16.mxu0 0
        %1136 = vmatpush2.bf16.msra.mxu0 %v948
        %1137 = vmatprep.subr.bf16.mxu0 0
        %1138 = vmatpush2.bf16.msra.mxu0 %v947
        %1139 = vmatprep.subr.bf16.mxu0 0
        %1140 = vmatpush2.bf16.msra.mxu0 %v946
        %1141 = vmatprep.subr.bf16.mxu0 0
        %1142 = vmatpush2.bf16.msra.mxu0 %v945
        %1143 = vmatprep.subr.bf16.mxu0 0
        %1144 = vmatpush2.bf16.msra.mxu0 %v944
        %1145 = vmatprep.subr.bf16.mxu0 0
        %1146 = vmatpush2.bf16.msra.mxu0 %v943
        %1147 = vmatprep.mubr.bf16.mxu0 %v1052
        %1148 = vmatmul.mubr.bf16.gmra.mxu0 %v1051
        %v1149 = vpop.f32.mrf.mxu0
        %v1150 = vadd.f32 %v954, %v1149
        %v1151 = vpop.f32.mrf.mxu0
        %v1152 = vpop.f32.mrf.mxu0
        %v1153 = vadd.f32 %v954, %v1152
        %v1154 = vpop.f32.mrf.mxu0
        %1155 = vmatprep.mubr.bf16.mxu0 %v1054
        %1156 = vmatmul.mubr.bf16.gmra.mxu0 %v1053
        %v1157 = vpop.f32.mrf.mxu0
        %v1158 = vadd.f32 %v954, %v1157
        %v1159 = vpop.f32.mrf.mxu0
        %v1160 = vpop.f32.mrf.mxu0
        %v1161 = vadd.f32 %v954, %v1160
        %v1162 = vpop.f32.mrf.mxu0
        %1163 = vmatprep.mubr.bf16.mxu0 %v1056
        %1164 = vmatmul.mubr.bf16.gmra.mxu0 %v1055
        %v1165 = vpop.f32.mrf.mxu0
        %v1166 = vadd.f32 %v954, %v1165
        %v1167 = vpop.f32.mrf.mxu0
        %v1168 = vpop.f32.mrf.mxu0
        %v1169 = vadd.f32 %v954, %v1168
        %v1170 = vpop.f32.mrf.mxu0
        %1171 = vmatprep.mubr.bf16.mxu0 %v1058
        %1172 = vmatmul.mubr.bf16.gmra.mxu0 %v1057
        %v1173 = vpop.f32.mrf.mxu0
        %v1174 = vadd.f32 %v954, %v1173
        %v1175 = vpop.f32.mrf.mxu0
        %v1176 = vpop.f32.mrf.mxu0
        %v1177 = vadd.f32 %v954, %v1176
        %v1178 = vpop.f32.mrf.mxu0
        %1179 = vmatprep.mubr.bf16.mxu0 %v1060
        %1180 = vmatmul.mubr.bf16.gmra.mxu0 %v1059
        %v1181 = vpop.f32.mrf.mxu0
        %v1182 = vadd.f32 %v954, %v1181
        %v1183 = vpop.f32.mrf.mxu0
        %v1184 = vpop.f32.mrf.mxu0
        %v1185 = vadd.f32 %v954, %v1184
        %v1186 = vpop.f32.mrf.mxu0
        %1187 = vmatprep.mubr.bf16.mxu0 %v1062
        %1188 = vmatmul.mubr.bf16.gmra.mxu0 %v1061
        %v1189 = vpop.f32.mrf.mxu0
        %v1190 = vadd.f32 %v954, %v1189
        %v1191 = vpop.f32.mrf.mxu0
        %v1192 = vpop.f32.mrf.mxu0
        %v1193 = vadd.f32 %v954, %v1192
        %v1194 = vpop.f32.mrf.mxu0
        %1195 = vmatprep.mubr.bf16.mxu0 %v1064
        %1196 = vmatmul.mubr.bf16.gmra.mxu0 %v1063
        %v1197 = vpop.f32.mrf.mxu0
        %v1198 = vadd.f32 %v954, %v1197
        %v1199 = vpop.f32.mrf.mxu0
        %v1200 = vpop.f32.mrf.mxu0
        %v1201 = vadd.f32 %v954, %v1200
        %v1202 = vpop.f32.mrf.mxu0
        %1203 = vmatprep.mubr.bf16.mxu0 %v1066
        %1204 = vmatmul.mubr.bf16.gmra.mxu0 %v1065
        %v1205 = vpop.f32.mrf.mxu0
        %v1206 = vadd.f32 %v954, %v1205
        %v1207 = vpop.f32.mrf.mxu0
        %v1208 = vpop.f32.mrf.mxu0
        %v1209 = vadd.f32 %v954, %v1208
        %v1210 = vpop.f32.mrf.mxu0
        %1211 = vmatprep.mubr.bf16.mxu0 %v1068
        %1212 = vmatmul.mubr.bf16.gmra.mxu0 %v1067
        %v1213 = vpop.f32.mrf.mxu0
        %v1214 = vadd.f32 %v954, %v1213
        %v1215 = vpop.f32.mrf.mxu0
        %v1216 = vpop.f32.mrf.mxu0
        %v1217 = vadd.f32 %v954, %v1216
        %v1218 = vpop.f32.mrf.mxu0
        %1219 = vmatprep.mubr.bf16.mxu0 %v1070
        %1220 = vmatmul.mubr.bf16.gmra.mxu0 %v1069
        %v1221 = vpop.f32.mrf.mxu0
        %v1222 = vadd.f32 %v954, %v1221
        %v1223 = vpop.f32.mrf.mxu0
        %v1224 = vpop.f32.mrf.mxu0
        %v1225 = vadd.f32 %v954, %v1224
        %v1226 = vpop.f32.mrf.mxu0
        %1227 = vmatprep.mubr.bf16.mxu0 %v1072
        %1228 = vmatmul.mubr.bf16.gmra.mxu0 %v1071
        %v1229 = vpop.f32.mrf.mxu0
        %v1230 = vadd.f32 %v954, %v1229
        %v1231 = vpop.f32.mrf.mxu0
        %v1232 = vpop.f32.mrf.mxu0
        %v1233 = vadd.f32 %v954, %v1232
        %v1234 = vpop.f32.mrf.mxu0
        %1235 = vmatprep.mubr.bf16.mxu0 %v1074
        %1236 = vmatmul.mubr.bf16.gmra.mxu0 %v1073
        %v1237 = vpop.f32.mrf.mxu0
        %v1238 = vadd.f32 %v954, %v1237
        %v1239 = vpop.f32.mrf.mxu0
        %v1240 = vpop.f32.mrf.mxu0
        %v1241 = vadd.f32 %v954, %v1240
        %v1242 = vpop.f32.mrf.mxu0
        %1243 = vmatprep.mubr.bf16.mxu0 %v1076
        %1244 = vmatmul.mubr.bf16.gmra.mxu0 %v1075
        %v1245 = vpop.f32.mrf.mxu0
        %v1246 = vadd.f32 %v954, %v1245
        %v1247 = vpop.f32.mrf.mxu0
        %v1248 = vpop.f32.mrf.mxu0
        %v1249 = vadd.f32 %v954, %v1248
        %v1250 = vpop.f32.mrf.mxu0
        %1251 = vmatprep.mubr.bf16.mxu0 %v1078
        %1252 = vmatmul.mubr.bf16.gmra.mxu0 %v1077
        %v1253 = vpop.f32.mrf.mxu0
        %v1254 = vadd.f32 %v954, %v1253
        %v1255 = vpop.f32.mrf.mxu0
        %v1256 = vpop.f32.mrf.mxu0
        %v1257 = vadd.f32 %v954, %v1256
        %v1258 = vpop.f32.mrf.mxu0
        %1259 = vmatprep.mubr.bf16.mxu0 %v1080
        %1260 = vmatmul.mubr.bf16.gmra.mxu0 %v1079
        %v1261 = vpop.f32.mrf.mxu0
        %v1262 = vadd.f32 %v954, %v1261
        %v1263 = vpop.f32.mrf.mxu0
        %v1264 = vpop.f32.mrf.mxu0
        %v1265 = vadd.f32 %v954, %v1264
        %v1266 = vpop.f32.mrf.mxu0
        %1267 = vmatprep.mubr.bf16.mxu0 %v1082
        %1268 = vmatmul.mubr.bf16.gmra.mxu0 %v1081
        %v1269 = vpop.f32.mrf.mxu0
        %v1270 = vadd.f32 %v954, %v1269
        %v1271 = vpop.f32.mrf.mxu0
        %v1272 = vpop.f32.mrf.mxu0
        %v1273 = vadd.f32 %v954, %v1272
        %v1274 = vpop.f32.mrf.mxu0
        %1275 = vdwg.mxu0
        %v1276 = vmax.f32 %v1150, 0.0
        %v1277 = vmax.f32 %v1153, 0.0
        %v1278 = vmax.f32 %v1158, 0.0
        %v1279 = vmax.f32 %v1161, 0.0
        %v1280 = vmax.f32 %v1166, 0.0
        %v1281 = vmax.f32 %v1169, 0.0
        %v1282 = vmax.f32 %v1174, 0.0
        %v1283 = vmax.f32 %v1177, 0.0
        %v1284 = vmax.f32 %v1182, 0.0
        %v1285 = vmax.f32 %v1185, 0.0
        %v1286 = vmax.f32 %v1190, 0.0
        %v1287 = vmax.f32 %v1193, 0.0
        %v1288 = vmax.f32 %v1198, 0.0
        %v1289 = vmax.f32 %v1201, 0.0
        %v1290 = vmax.f32 %v1206, 0.0
        %v1291 = vmax.f32 %v1209, 0.0
        %v1292 = vmax.f32 %v1214, 0.0
        %v1293 = vmax.f32 %v1217, 0.0
        %v1294 = vmax.f32 %v1222, 0.0
        %v1295 = vmax.f32 %v1225, 0.0
        %v1296 = vmax.f32 %v1230, 0.0
        %v1297 = vmax.f32 %v1233, 0.0
        %v1298 = vmax.f32 %v1238, 0.0
        %v1299 = vmax.f32 %v1241, 0.0
        %v1300 = vmax.f32 %v1246, 0.0
        %v1301 = vmax.f32 %v1249, 0.0
        %v1302 = vmax.f32 %v1254, 0.0
        %v1303 = vmax.f32 %v1257, 0.0
        %v1304 = vmax.f32 %v1262, 0.0
        %v1305 = vmax.f32 %v1265, 0.0
        %v1306 = vmax.f32 %v1270, 0.0
        %v1307 = vmax.f32 %v1273, 0.0
        %v1308 = vpack.c.bf16 %v1277, %v1276
        %v1309 = vpack.c.bf16 %v1279, %v1278
        %v1310 = vpack.c.bf16 %v1281, %v1280
        %v1311 = vpack.c.bf16 %v1283, %v1282
        %v1312 = vpack.c.bf16 %v1285, %v1284
        %v1313 = vpack.c.bf16 %v1287, %v1286
        %v1314 = vpack.c.bf16 %v1289, %v1288
        %v1315 = vpack.c.bf16 %v1291, %v1290
        %v1316 = vpack.c.bf16 %v1293, %v1292
        %v1317 = vpack.c.bf16 %v1295, %v1294
        %v1318 = vpack.c.bf16 %v1297, %v1296
        %v1319 = vpack.c.bf16 %v1299, %v1298
        %v1320 = vpack.c.bf16 %v1301, %v1300
        %v1321 = vpack.c.bf16 %v1303, %v1302
        %v1322 = vpack.c.bf16 %v1305, %v1304
        %v1323 = vpack.c.bf16 %v1307, %v1306
        %v1324 = vld [vmem:[#allocation6] sm:$0xf]
        %v1325 = vld [vmem:[#allocation6 + $0x4] sm:$0xf]
        %v1326 = vld [vmem:[#allocation6 + $0x8] sm:$0xf]
        %v1327 = vld [vmem:[#allocation6 + $0xc] sm:$0xf]
        %v1328 = vld [vmem:[#allocation6 + $0x10] sm:$0xf]
        %v1329 = vld [vmem:[#allocation6 + $0x14] sm:$0xf]
        %v1330 = vld [vmem:[#allocation6 + $0x18] sm:$0xf]
        %v1331 = vld [vmem:[#allocation6 + $0x1c] sm:$0xf]
        %v1332 = vld [vmem:[#allocation6 + $0x20] sm:$0xf]
        %v1333 = vld [vmem:[#allocation6 + $0x24] sm:$0xf]
        %v1334 = vld [vmem:[#allocation6 + $0x28] sm:$0xf]
        %v1335 = vld [vmem:[#allocation6 + $0x2c] sm:$0xf]
        %v1336 = vld [vmem:[#allocation6 + $0x30] sm:$0xf]
        %v1337 = vld [vmem:[#allocation6 + $0x34] sm:$0xf]
        %v1338 = vld [vmem:[#allocation6 + $0x38] sm:$0xf]
        %v1339 = vld [vmem:[#allocation6 + $0x3c] sm:$0xf]
        %v1356 = vunpack.c.l.b16 %v1324
        %v1357 = vunpack.c.l.b16 %v1325
        %v1358 = vunpack.c.l.b16 %v1326
        %v1359 = vunpack.c.l.b16 %v1327
        %v1360 = vunpack.c.l.b16 %v1328
        %v1361 = vunpack.c.l.b16 %v1329
        %v1362 = vunpack.c.l.b16 %v1330
        %v1363 = vunpack.c.l.b16 %v1331
        %v1364 = vunpack.c.l.b16 %v1332
        %v1365 = vunpack.c.l.b16 %v1333
        %v1366 = vunpack.c.l.b16 %v1334
        %v1367 = vunpack.c.l.b16 %v1335
        %v1368 = vunpack.c.l.b16 %v1336
        %v1369 = vunpack.c.l.b16 %v1337
        %v1370 = vunpack.c.l.b16 %v1338
        %v1371 = vunpack.c.l.b16 %v1339
        %v1372 = vpack.c.b16 %v1357, %v1356
        %v1373 = vpack.c.b16 %v1359, %v1358
        %v1374 = vpack.c.b16 %v1361, %v1360
        %v1375 = vpack.c.b16 %v1363, %v1362
        %v1376 = vpack.c.b16 %v1365, %v1364
        %v1377 = vpack.c.b16 %v1367, %v1366
        %v1378 = vpack.c.b16 %v1369, %v1368
        %v1379 = vpack.c.b16 %v1371, %v1370
        %1388 = vmatprep.subr.bf16.mxu0 0
        %1389 = vmatpush1.bf16.msra.mxu0 %v1379
        %1390 = vmatprep.subr.bf16.mxu0 0
        %1391 = vmatpush1.bf16.msra.mxu0 %v1378
        %1392 = vmatprep.subr.bf16.mxu0 0
        %1393 = vmatpush1.bf16.msra.mxu0 %v1377
        %1394 = vmatprep.subr.bf16.mxu0 0
        %1395 = vmatpush1.bf16.msra.mxu0 %v1376
        %1396 = vmatprep.subr.bf16.mxu0 0
        %1397 = vmatpush1.bf16.msra.mxu0 %v1375
        %1398 = vmatprep.subr.bf16.mxu0 0
        %1399 = vmatpush1.bf16.msra.mxu0 %v1374
        %1400 = vmatprep.subr.bf16.mxu0 0
        %1401 = vmatpush1.bf16.msra.mxu0 %v1373
        %1402 = vmatprep.subr.bf16.mxu0 0
        %1403 = vmatpush1.bf16.msra.mxu0 %v1372
        %1404 = vmatprep.subr.bf16.mxu0 0
        %1405 = vmatpush2.bf16.msra.mxu0 0
        %1406 = vmatprep.subr.bf16.mxu0 0
        %1407 = vmatpush2.bf16.msra.mxu0 0
        %1408 = vmatprep.subr.bf16.mxu0 0
        %1409 = vmatpush2.bf16.msra.mxu0 0
        %1410 = vmatprep.subr.bf16.mxu0 0
        %1411 = vmatpush2.bf16.msra.mxu0 0
        %1412 = vmatprep.subr.bf16.mxu0 0
        %1413 = vmatpush2.bf16.msra.mxu0 0
        %1414 = vmatprep.subr.bf16.mxu0 0
        %1415 = vmatpush2.bf16.msra.mxu0 0
        %1416 = vmatprep.subr.bf16.mxu0 0
        %1417 = vmatpush2.bf16.msra.mxu0 0
        %1418 = vmatprep.subr.bf16.mxu0 0
        %1419 = vmatpush2.bf16.msra.mxu0 0
        %1420 = vmatprep.mubr.bf16.mxu0 0
        %1421 = vmatmul.mubr.bf16.gmra.mxu0 %v1308
        %v1422 = vpop.f32.mrf.mxu0
        %v1423 = vadd.f32 0.0, %v1422
        %v1424 = vpop.f32.mrf.mxu0
        %v1425 = vpop.f32.mrf.mxu0
        %v1426 = vadd.f32 0.0, %v1425
        %v1427 = vpop.f32.mrf.mxu0
        %1428 = vmatprep.mubr.bf16.mxu0 0
        %1429 = vmatmul.mubr.bf16.gmra.mxu0 %v1309
        %v1430 = vpop.f32.mrf.mxu0
        %v1431 = vadd.f32 0.0, %v1430
        %v1432 = vpop.f32.mrf.mxu0
        %v1433 = vpop.f32.mrf.mxu0
        %v1434 = vadd.f32 0.0, %v1433
        %v1435 = vpop.f32.mrf.mxu0
        %1436 = vmatprep.mubr.bf16.mxu0 0
        %1437 = vmatmul.mubr.bf16.gmra.mxu0 %v1310
        %v1438 = vpop.f32.mrf.mxu0
        %v1439 = vadd.f32 0.0, %v1438
        %v1440 = vpop.f32.mrf.mxu0
        %v1441 = vpop.f32.mrf.mxu0
        %v1442 = vadd.f32 0.0, %v1441
        %v1443 = vpop.f32.mrf.mxu0
        %1444 = vmatprep.mubr.bf16.mxu0 0
        %1445 = vmatmul.mubr.bf16.gmra.mxu0 %v1311
        %v1446 = vpop.f32.mrf.mxu0
        %v1447 = vadd.f32 0.0, %v1446
        %v1448 = vpop.f32.mrf.mxu0
        %v1449 = vpop.f32.mrf.mxu0
        %v1450 = vadd.f32 0.0, %v1449
        %v1451 = vpop.f32.mrf.mxu0
        %1452 = vmatprep.mubr.bf16.mxu0 0
        %1453 = vmatmul.mubr.bf16.gmra.mxu0 %v1312
        %v1454 = vpop.f32.mrf.mxu0
        %v1455 = vadd.f32 0.0, %v1454
        %v1456 = vpop.f32.mrf.mxu0
        %v1457 = vpop.f32.mrf.mxu0
        %v1458 = vadd.f32 0.0, %v1457
        %v1459 = vpop.f32.mrf.mxu0
        %1460 = vmatprep.mubr.bf16.mxu0 0
        %1461 = vmatmul.mubr.bf16.gmra.mxu0 %v1313
        %v1462 = vpop.f32.mrf.mxu0
        %v1463 = vadd.f32 0.0, %v1462
        %v1464 = vpop.f32.mrf.mxu0
        %v1465 = vpop.f32.mrf.mxu0
        %v1466 = vadd.f32 0.0, %v1465
        %v1467 = vpop.f32.mrf.mxu0
        %1468 = vmatprep.mubr.bf16.mxu0 0
        %1469 = vmatmul.mubr.bf16.gmra.mxu0 %v1314
        %v1470 = vpop.f32.mrf.mxu0
        %v1471 = vadd.f32 0.0, %v1470
        %v1472 = vpop.f32.mrf.mxu0
        %v1473 = vpop.f32.mrf.mxu0
        %v1474 = vadd.f32 0.0, %v1473
        %v1475 = vpop.f32.mrf.mxu0
        %1476 = vmatprep.mubr.bf16.mxu0 0
        %1477 = vmatmul.mubr.bf16.gmra.mxu0 %v1315
        %v1478 = vpop.f32.mrf.mxu0
        %v1479 = vadd.f32 0.0, %v1478
        %v1480 = vpop.f32.mrf.mxu0
        %v1481 = vpop.f32.mrf.mxu0
        %v1482 = vadd.f32 0.0, %v1481
        %v1483 = vpop.f32.mrf.mxu0
        %1484 = vmatprep.mubr.bf16.mxu0 0
        %1485 = vmatmul.mubr.bf16.gmra.mxu0 %v1316
        %v1486 = vpop.f32.mrf.mxu0
        %v1487 = vadd.f32 0.0, %v1486
        %v1488 = vpop.f32.mrf.mxu0
        %v1489 = vpop.f32.mrf.mxu0
        %v1490 = vadd.f32 0.0, %v1489
        %v1491 = vpop.f32.mrf.mxu0
        %1492 = vmatprep.mubr.bf16.mxu0 0
        %1493 = vmatmul.mubr.bf16.gmra.mxu0 %v1317
        %v1494 = vpop.f32.mrf.mxu0
        %v1495 = vadd.f32 0.0, %v1494
        %v1496 = vpop.f32.mrf.mxu0
        %v1497 = vpop.f32.mrf.mxu0
        %v1498 = vadd.f32 0.0, %v1497
        %v1499 = vpop.f32.mrf.mxu0
        %1500 = vmatprep.mubr.bf16.mxu0 0
        %1501 = vmatmul.mubr.bf16.gmra.mxu0 %v1318
        %v1502 = vpop.f32.mrf.mxu0
        %v1503 = vadd.f32 0.0, %v1502
        %v1504 = vpop.f32.mrf.mxu0
        %v1505 = vpop.f32.mrf.mxu0
        %v1506 = vadd.f32 0.0, %v1505
        %v1507 = vpop.f32.mrf.mxu0
        %1508 = vmatprep.mubr.bf16.mxu0 0
        %1509 = vmatmul.mubr.bf16.gmra.mxu0 %v1319
        %v1510 = vpop.f32.mrf.mxu0
        %v1511 = vadd.f32 0.0, %v1510
        %v1512 = vpop.f32.mrf.mxu0
        %v1513 = vpop.f32.mrf.mxu0
        %v1514 = vadd.f32 0.0, %v1513
        %v1515 = vpop.f32.mrf.mxu0
        %1516 = vmatprep.mubr.bf16.mxu0 0
        %1517 = vmatmul.mubr.bf16.gmra.mxu0 %v1320
        %v1518 = vpop.f32.mrf.mxu0
        %v1519 = vadd.f32 0.0, %v1518
        %v1520 = vpop.f32.mrf.mxu0
        %v1521 = vpop.f32.mrf.mxu0
        %v1522 = vadd.f32 0.0, %v1521
        %v1523 = vpop.f32.mrf.mxu0
        %1524 = vmatprep.mubr.bf16.mxu0 0
        %1525 = vmatmul.mubr.bf16.gmra.mxu0 %v1321
        %v1526 = vpop.f32.mrf.mxu0
        %v1527 = vadd.f32 0.0, %v1526
        %v1528 = vpop.f32.mrf.mxu0
        %v1529 = vpop.f32.mrf.mxu0
        %v1530 = vadd.f32 0.0, %v1529
        %v1531 = vpop.f32.mrf.mxu0
        %1532 = vmatprep.mubr.bf16.mxu0 0
        %1533 = vmatmul.mubr.bf16.gmra.mxu0 %v1322
        %v1534 = vpop.f32.mrf.mxu0
        %v1535 = vadd.f32 0.0, %v1534
        %v1536 = vpop.f32.mrf.mxu0
        %v1537 = vpop.f32.mrf.mxu0
        %v1538 = vadd.f32 0.0, %v1537
        %v1539 = vpop.f32.mrf.mxu0
        %1540 = vmatprep.mubr.bf16.mxu0 0
        %1541 = vmatmul.mubr.bf16.gmra.mxu0 %v1323
        %v1542 = vpop.f32.mrf.mxu0
        %v1543 = vadd.f32 0.0, %v1542
        %v1544 = vpop.f32.mrf.mxu0
        %v1545 = vpop.f32.mrf.mxu0
        %v1546 = vadd.f32 0.0, %v1545
        %v1547 = vpop.f32.mrf.mxu0
        %1548 = vdwg.mxu0
        %v1549 = vpack.c.bf16 %v1426, %v1423
        %v1550 = vpack.c.bf16 %v1434, %v1431
        %v1551 = vpack.c.bf16 %v1442, %v1439
        %v1552 = vpack.c.bf16 %v1450, %v1447
        %v1553 = vpack.c.bf16 %v1458, %v1455
        %v1554 = vpack.c.bf16 %v1466, %v1463
        %v1555 = vpack.c.bf16 %v1474, %v1471
        %v1556 = vpack.c.bf16 %v1482, %v1479
        %v1557 = vpack.c.bf16 %v1490, %v1487
        %v1558 = vpack.c.bf16 %v1498, %v1495
        %v1559 = vpack.c.bf16 %v1506, %v1503
        %v1560 = vpack.c.bf16 %v1514, %v1511
        %v1561 = vpack.c.bf16 %v1522, %v1519
        %v1562 = vpack.c.bf16 %v1530, %v1527
        %v1563 = vpack.c.bf16 %v1538, %v1535
        %v1564 = vpack.c.bf16 %v1546, %v1543
        %v1565 = vlaneseq
        %v1566 = vshrl.u32 %v1565, 7
        %v1567 = vsub.s32 1, %v1566
        %v1568 = vrot.slane %v369, %v1567
        %1569 = vmatprep.subr.bf16.mxu0 0
        %1570 = vmatpush1.bf16.msra.mxu0 %v1556
        %1571 = vmatprep.subr.bf16.mxu0 0
        %1572 = vmatpush1.bf16.msra.mxu0 %v1555
        %1573 = vmatprep.subr.bf16.mxu0 0
        %1574 = vmatpush1.bf16.msra.mxu0 %v1554
        %1575 = vmatprep.subr.bf16.mxu0 0
        %1576 = vmatpush1.bf16.msra.mxu0 %v1553
        %1577 = vmatprep.subr.bf16.mxu0 0
        %1578 = vmatpush1.bf16.msra.mxu0 %v1552
        %1579 = vmatprep.subr.bf16.mxu0 0
        %1580 = vmatpush1.bf16.msra.mxu0 %v1551
        %1581 = vmatprep.subr.bf16.mxu0 0
        %1582 = vmatpush1.bf16.msra.mxu0 %v1550
        %1583 = vmatprep.subr.bf16.mxu0 0
        %1584 = vmatpush1.bf16.msra.mxu0 %v1549
        %1585 = vmatprep.subr.bf16.mxu0 0
        %1586 = vmatpush2.bf16.msra.mxu0 %v1564
        %1587 = vmatprep.subr.bf16.mxu0 0
        %1588 = vmatpush2.bf16.msra.mxu0 %v1563
        %1589 = vmatprep.subr.bf16.mxu0 0
        %1590 = vmatpush2.bf16.msra.mxu0 %v1562
        %1591 = vmatprep.subr.bf16.mxu0 0
        %1592 = vmatpush2.bf16.msra.mxu0 %v1561
        %1593 = vmatprep.subr.bf16.mxu0 0
        %1594 = vmatpush2.bf16.msra.mxu0 %v1560
        %1595 = vmatprep.subr.bf16.mxu0 0
        %1596 = vmatpush2.bf16.msra.mxu0 %v1559
        %1597 = vmatprep.subr.bf16.mxu0 0
        %1598 = vmatpush2.bf16.msra.mxu0 %v1558
        %1599 = vmatprep.subr.bf16.mxu0 0
        %1600 = vmatpush2.bf16.msra.mxu0 %v1557
        %1601 = vmatprep.mubr.bf16.mxu0 %v1052
        %1602 = vmatmul.mubr.bf16.gmra.mxu0 %v1051
        %v1603 = vpop.f32.mrf.mxu0
        %v1604 = vadd.f32 %v1568, %v1603
        %v1605 = vpop.f32.mrf.mxu0
        %v1606 = vpop.f32.mrf.mxu0
        %v1607 = vadd.f32 %v1568, %v1606
        %v1608 = vpop.f32.mrf.mxu0
        %1609 = vmatprep.mubr.bf16.mxu0 %v1054
        %1610 = vmatmul.mubr.bf16.gmra.mxu0 %v1053
        %v1611 = vpop.f32.mrf.mxu0
        %v1612 = vadd.f32 %v1568, %v1611
        %v1613 = vpop.f32.mrf.mxu0
        %v1614 = vpop.f32.mrf.mxu0
        %v1615 = vadd.f32 %v1568, %v1614
        %v1616 = vpop.f32.mrf.mxu0
        %1617 = vmatprep.mubr.bf16.mxu0 %v1056
        %1618 = vmatmul.mubr.bf16.gmra.mxu0 %v1055
        %v1619 = vpop.f32.mrf.mxu0
        %v1620 = vadd.f32 %v1568, %v1619
        %v1621 = vpop.f32.mrf.mxu0
        %v1622 = vpop.f32.mrf.mxu0
        %v1623 = vadd.f32 %v1568, %v1622
        %v1624 = vpop.f32.mrf.mxu0
        %1625 = vmatprep.mubr.bf16.mxu0 %v1058
        %1626 = vmatmul.mubr.bf16.gmra.mxu0 %v1057
        %v1627 = vpop.f32.mrf.mxu0
        %v1628 = vadd.f32 %v1568, %v1627
        %v1629 = vpop.f32.mrf.mxu0
        %v1630 = vpop.f32.mrf.mxu0
        %v1631 = vadd.f32 %v1568, %v1630
        %v1632 = vpop.f32.mrf.mxu0
        %1633 = vmatprep.mubr.bf16.mxu0 %v1060
        %1634 = vmatmul.mubr.bf16.gmra.mxu0 %v1059
        %v1635 = vpop.f32.mrf.mxu0
        %v1636 = vadd.f32 %v1568, %v1635
        %v1637 = vpop.f32.mrf.mxu0
        %v1638 = vpop.f32.mrf.mxu0
        %v1639 = vadd.f32 %v1568, %v1638
        %v1640 = vpop.f32.mrf.mxu0
        %1641 = vmatprep.mubr.bf16.mxu0 %v1062
        %1642 = vmatmul.mubr.bf16.gmra.mxu0 %v1061
        %v1643 = vpop.f32.mrf.mxu0
        %v1644 = vadd.f32 %v1568, %v1643
        %v1645 = vpop.f32.mrf.mxu0
        %v1646 = vpop.f32.mrf.mxu0
        %v1647 = vadd.f32 %v1568, %v1646
        %v1648 = vpop.f32.mrf.mxu0
        %1649 = vmatprep.mubr.bf16.mxu0 %v1064
        %1650 = vmatmul.mubr.bf16.gmra.mxu0 %v1063
        %v1651 = vpop.f32.mrf.mxu0
        %v1652 = vadd.f32 %v1568, %v1651
        %v1653 = vpop.f32.mrf.mxu0
        %v1654 = vpop.f32.mrf.mxu0
        %v1655 = vadd.f32 %v1568, %v1654
        %v1656 = vpop.f32.mrf.mxu0
        %1657 = vmatprep.mubr.bf16.mxu0 %v1066
        %1658 = vmatmul.mubr.bf16.gmra.mxu0 %v1065
        %v1659 = vpop.f32.mrf.mxu0
        %v1660 = vadd.f32 %v1568, %v1659
        %v1661 = vpop.f32.mrf.mxu0
        %v1662 = vpop.f32.mrf.mxu0
        %v1663 = vadd.f32 %v1568, %v1662
        %v1664 = vpop.f32.mrf.mxu0
        %1665 = vmatprep.mubr.bf16.mxu0 %v1068
        %1666 = vmatmul.mubr.bf16.gmra.mxu0 %v1067
        %v1667 = vpop.f32.mrf.mxu0
        %v1668 = vadd.f32 %v1568, %v1667
        %v1669 = vpop.f32.mrf.mxu0
        %v1670 = vpop.f32.mrf.mxu0
        %v1671 = vadd.f32 %v1568, %v1670
        %v1672 = vpop.f32.mrf.mxu0
        %1673 = vmatprep.mubr.bf16.mxu0 %v1070
        %1674 = vmatmul.mubr.bf16.gmra.mxu0 %v1069
        %v1675 = vpop.f32.mrf.mxu0
        %v1676 = vadd.f32 %v1568, %v1675
        %v1677 = vpop.f32.mrf.mxu0
        %v1678 = vpop.f32.mrf.mxu0
        %v1679 = vadd.f32 %v1568, %v1678
        %v1680 = vpop.f32.mrf.mxu0
        %1681 = vmatprep.mubr.bf16.mxu0 %v1072
        %1682 = vmatmul.mubr.bf16.gmra.mxu0 %v1071
        %v1683 = vpop.f32.mrf.mxu0
        %v1684 = vadd.f32 %v1568, %v1683
        %v1685 = vpop.f32.mrf.mxu0
        %v1686 = vpop.f32.mrf.mxu0
        %v1687 = vadd.f32 %v1568, %v1686
        %v1688 = vpop.f32.mrf.mxu0
        %1689 = vmatprep.mubr.bf16.mxu0 %v1074
        %1690 = vmatmul.mubr.bf16.gmra.mxu0 %v1073
        %v1691 = vpop.f32.mrf.mxu0
        %v1692 = vadd.f32 %v1568, %v1691
        %v1693 = vpop.f32.mrf.mxu0
        %v1694 = vpop.f32.mrf.mxu0
        %v1695 = vadd.f32 %v1568, %v1694
        %v1696 = vpop.f32.mrf.mxu0
        %1697 = vmatprep.mubr.bf16.mxu0 %v1076
        %1698 = vmatmul.mubr.bf16.gmra.mxu0 %v1075
        %v1699 = vpop.f32.mrf.mxu0
        %v1700 = vadd.f32 %v1568, %v1699
        %v1701 = vpop.f32.mrf.mxu0
        %v1702 = vpop.f32.mrf.mxu0
        %v1703 = vadd.f32 %v1568, %v1702
        %v1704 = vpop.f32.mrf.mxu0
        %1705 = vmatprep.mubr.bf16.mxu0 %v1078
        %1706 = vmatmul.mubr.bf16.gmra.mxu0 %v1077
        %v1707 = vpop.f32.mrf.mxu0
        %v1708 = vadd.f32 %v1568, %v1707
        %v1709 = vpop.f32.mrf.mxu0
        %v1710 = vpop.f32.mrf.mxu0
        %v1711 = vadd.f32 %v1568, %v1710
        %v1712 = vpop.f32.mrf.mxu0
        %1713 = vmatprep.mubr.bf16.mxu0 %v1080
        %1714 = vmatmul.mubr.bf16.gmra.mxu0 %v1079
        %v1715 = vpop.f32.mrf.mxu0
        %v1716 = vadd.f32 %v1568, %v1715
        %v1717 = vpop.f32.mrf.mxu0
        %v1718 = vpop.f32.mrf.mxu0
        %v1719 = vadd.f32 %v1568, %v1718
        %v1720 = vpop.f32.mrf.mxu0
        %1721 = vmatprep.mubr.bf16.mxu0 %v1082
        %1722 = vmatmul.mubr.bf16.gmra.mxu0 %v1081
        %v1723 = vpop.f32.mrf.mxu0
        %v1724 = vadd.f32 %v1568, %v1723
        %v1725 = vpop.f32.mrf.mxu0
        %v1726 = vpop.f32.mrf.mxu0
        %v1727 = vadd.f32 %v1568, %v1726
        %v1728 = vpop.f32.mrf.mxu0
        %1729 = vdwg.mxu0
        %v1730 = vmax.f32 %v1604, 0.0
        %v1731 = vmax.f32 %v1607, 0.0
        %v1732 = vmax.f32 %v1612, 0.0
        %v1733 = vmax.f32 %v1615, 0.0
        %v1734 = vmax.f32 %v1620, 0.0
        %v1735 = vmax.f32 %v1623, 0.0
        %v1736 = vmax.f32 %v1628, 0.0
        %v1737 = vmax.f32 %v1631, 0.0
        %v1738 = vmax.f32 %v1636, 0.0
        %v1739 = vmax.f32 %v1639, 0.0
        %v1740 = vmax.f32 %v1644, 0.0
        %v1741 = vmax.f32 %v1647, 0.0
        %v1742 = vmax.f32 %v1652, 0.0
        %v1743 = vmax.f32 %v1655, 0.0
        %v1744 = vmax.f32 %v1660, 0.0
        %v1745 = vmax.f32 %v1663, 0.0
        %v1746 = vmax.f32 %v1668, 0.0
        %v1747 = vmax.f32 %v1671, 0.0
        %v1748 = vmax.f32 %v1676, 0.0
        %v1749 = vmax.f32 %v1679, 0.0
        %v1750 = vmax.f32 %v1684, 0.0
        %v1751 = vmax.f32 %v1687, 0.0
        %v1752 = vmax.f32 %v1692, 0.0
        %v1753 = vmax.f32 %v1695, 0.0
        %v1754 = vmax.f32 %v1700, 0.0
        %v1755 = vmax.f32 %v1703, 0.0
        %v1756 = vmax.f32 %v1708, 0.0
        %v1757 = vmax.f32 %v1711, 0.0
        %v1758 = vmax.f32 %v1716, 0.0
        %v1759 = vmax.f32 %v1719, 0.0
        %v1760 = vmax.f32 %v1724, 0.0
        %v1761 = vmax.f32 %v1727, 0.0
        %v1762 = vld [vmem:[%s367] sm:$0xff]
        %v1763 = vld [vmem:[%s367 + $0x8] sm:$0xff]
        %v1764 = vpack.c.bf16 %v1762, %v1762
        %v1765 = vpack.c.bf16 %v1763, %v1763
        %v1766 = vpack.c.bf16 %v1731, %v1730
        %v1767 = vpack.c.bf16 %v1733, %v1732
        %v1768 = vpack.c.bf16 %v1735, %v1734
        %v1769 = vpack.c.bf16 %v1737, %v1736
        %v1770 = vpack.c.bf16 %v1739, %v1738
        %v1771 = vpack.c.bf16 %v1741, %v1740
        %v1772 = vpack.c.bf16 %v1743, %v1742
        %v1773 = vpack.c.bf16 %v1745, %v1744
        %v1774 = vpack.c.bf16 %v1747, %v1746
        %v1775 = vpack.c.bf16 %v1749, %v1748
        %v1776 = vpack.c.bf16 %v1751, %v1750
        %v1777 = vpack.c.bf16 %v1753, %v1752
        %v1778 = vpack.c.bf16 %v1755, %v1754
        %v1779 = vpack.c.bf16 %v1757, %v1756
        %v1780 = vpack.c.bf16 %v1759, %v1758
        %v1781 = vpack.c.bf16 %v1761, %v1760
        %1782 = vmatprep.subr.bf16.mxu0 0
        %1783 = vmatpush1.bf16.msra.mxu0 %v1773
        %1784 = vmatprep.subr.bf16.mxu0 0
        %1785 = vmatpush1.bf16.msra.mxu0 %v1772
        %1786 = vmatprep.subr.bf16.mxu0 0
        %1787 = vmatpush1.bf16.msra.mxu0 %v1771
        %1788 = vmatprep.subr.bf16.mxu0 0
        %1789 = vmatpush1.bf16.msra.mxu0 %v1770
        %1790 = vmatprep.subr.bf16.mxu0 0
        %1791 = vmatpush1.bf16.msra.mxu0 %v1769
        %1792 = vmatprep.subr.bf16.mxu0 0
        %1793 = vmatpush1.bf16.msra.mxu0 %v1768
        %1794 = vmatprep.subr.bf16.mxu0 0
        %1795 = vmatpush1.bf16.msra.mxu0 %v1767
        %1796 = vmatprep.subr.bf16.mxu0 0
        %1797 = vmatpush1.bf16.msra.mxu0 %v1766
        %1798 = vmatprep.subr.bf16.mxu0 0
        %1799 = vmatpush2.bf16.msra.mxu0 %v1781
        %1800 = vmatprep.subr.bf16.mxu0 0
        %1801 = vmatpush2.bf16.msra.mxu0 %v1780
        %1802 = vmatprep.subr.bf16.mxu0 0
        %1803 = vmatpush2.bf16.msra.mxu0 %v1779
        %1804 = vmatprep.subr.bf16.mxu0 0
        %1805 = vmatpush2.bf16.msra.mxu0 %v1778
        %1806 = vmatprep.subr.bf16.mxu0 0
        %1807 = vmatpush2.bf16.msra.mxu0 %v1777
        %1808 = vmatprep.subr.bf16.mxu0 0
        %1809 = vmatpush2.bf16.msra.mxu0 %v1776
        %1810 = vmatprep.subr.bf16.mxu0 0
        %1811 = vmatpush2.bf16.msra.mxu0 %v1775
        %1812 = vmatprep.subr.bf16.mxu0 0
        %1813 = vmatpush2.bf16.msra.mxu0 %v1774
        %1814 = vmatprep.mubr.bf16.mxu0 %v1765
        %1815 = vmatmul.mubr.bf16.gmra.mxu0 %v1764
        %v1816 = vpop.f32.mrf.mxu0
        %v1817 = vadd.f32 0.0, %v1816
        %v1818 = vpop.f32.mrf.mxu0
        %v1819 = vpop.f32.mrf.mxu0
        %v1820 = vpop.f32.mrf.mxu0
        %1821 = vdwg.mxu0
        %v1822 = vpack.c.bf16 %v1817, %v1817
        %v1823 = vld [vmem:[#allocation8] sm:$0xf]
        %v1824 = vld [vmem:[#allocation8 + $0x4] sm:$0xf]
        %v1825 = vld [vmem:[#allocation8 + $0x8] sm:$0xf]
        %v1826 = vld [vmem:[#allocation8 + $0xc] sm:$0xf]
        %v1827 = vld [vmem:[#allocation8 + $0x10] sm:$0xf]
        %v1828 = vld [vmem:[#allocation8 + $0x14] sm:$0xf]
        %v1829 = vld [vmem:[#allocation8 + $0x18] sm:$0xf]
        %v1830 = vld [vmem:[#allocation8 + $0x1c] sm:$0xf]
        %v1831 = vld [vmem:[#allocation8 + $0x20] sm:$0xf]
        %v1832 = vld [vmem:[#allocation8 + $0x24] sm:$0xf]
        %v1833 = vld [vmem:[#allocation8 + $0x28] sm:$0xf]
        %v1834 = vld [vmem:[#allocation8 + $0x2c] sm:$0xf]
        %v1835 = vld [vmem:[#allocation8 + $0x30] sm:$0xf]
        %v1836 = vld [vmem:[#allocation8 + $0x34] sm:$0xf]
        %v1837 = vld [vmem:[#allocation8 + $0x38] sm:$0xf]
        %v1838 = vld [vmem:[#allocation8 + $0x3c] sm:$0xf]
        %v1839 = vlaneseq
        %v1840 = vshrl.u32 %v1839, 7
        %v1841 = vsub.s32 2, %v1840
        %v1842 = vrot.slane %v369, %v1841
        %v1859 = vunpack.c.l.b16 %v1823
        %v1860 = vunpack.c.l.b16 %v1824
        %v1861 = vunpack.c.l.b16 %v1825
        %v1862 = vunpack.c.l.b16 %v1826
        %v1863 = vunpack.c.l.b16 %v1827
        %v1864 = vunpack.c.l.b16 %v1828
        %v1865 = vunpack.c.l.b16 %v1829
        %v1866 = vunpack.c.l.b16 %v1830
        %v1867 = vunpack.c.l.b16 %v1831
        %v1868 = vunpack.c.l.b16 %v1832
        %v1869 = vunpack.c.l.b16 %v1833
        %v1870 = vunpack.c.l.b16 %v1834
        %v1871 = vunpack.c.l.b16 %v1835
        %v1872 = vunpack.c.l.b16 %v1836
        %v1873 = vunpack.c.l.b16 %v1837
        %v1874 = vunpack.c.l.b16 %v1838
        %v1875 = vpack.c.b16 %v1860, %v1859
        %v1876 = vpack.c.b16 %v1862, %v1861
        %v1877 = vpack.c.b16 %v1864, %v1863
        %v1878 = vpack.c.b16 %v1866, %v1865
        %v1879 = vpack.c.b16 %v1868, %v1867
        %v1880 = vpack.c.b16 %v1870, %v1869
        %v1881 = vpack.c.b16 %v1872, %v1871
        %v1882 = vpack.c.b16 %v1874, %v1873
        %1891 = vmatprep.subr.bf16.mxu0 0
        %1892 = vmatpush1.bf16.msra.mxu0 %v1882
        %1893 = vmatprep.subr.bf16.mxu0 0
        %1894 = vmatpush1.bf16.msra.mxu0 %v1881
        %1895 = vmatprep.subr.bf16.mxu0 0
        %1896 = vmatpush1.bf16.msra.mxu0 %v1880
        %1897 = vmatprep.subr.bf16.mxu0 0
        %1898 = vmatpush1.bf16.msra.mxu0 %v1879
        %1899 = vmatprep.subr.bf16.mxu0 0
        %1900 = vmatpush1.bf16.msra.mxu0 %v1878
        %1901 = vmatprep.subr.bf16.mxu0 0
        %1902 = vmatpush1.bf16.msra.mxu0 %v1877
        %1903 = vmatprep.subr.bf16.mxu0 0
        %1904 = vmatpush1.bf16.msra.mxu0 %v1876
        %1905 = vmatprep.subr.bf16.mxu0 0
        %1906 = vmatpush1.bf16.msra.mxu0 %v1875
        %1907 = vmatprep.subr.bf16.mxu0 0
        %1908 = vmatpush2.bf16.msra.mxu0 0
        %1909 = vmatprep.subr.bf16.mxu0 0
        %1910 = vmatpush2.bf16.msra.mxu0 0
        %1911 = vmatprep.subr.bf16.mxu0 0
        %1912 = vmatpush2.bf16.msra.mxu0 0
        %1913 = vmatprep.subr.bf16.mxu0 0
        %1914 = vmatpush2.bf16.msra.mxu0 0
        %1915 = vmatprep.subr.bf16.mxu0 0
        %1916 = vmatpush2.bf16.msra.mxu0 0
        %1917 = vmatprep.subr.bf16.mxu0 0
        %1918 = vmatpush2.bf16.msra.mxu0 0
        %1919 = vmatprep.subr.bf16.mxu0 0
        %1920 = vmatpush2.bf16.msra.mxu0 0
        %1921 = vmatprep.subr.bf16.mxu0 0
        %1922 = vmatpush2.bf16.msra.mxu0 0
        %1923 = vmatprep.mubr.bf16.mxu0 0
        %1924 = vmatmul.mubr.bf16.gmra.mxu0 %v1822
        %v1925 = vpop.f32.mrf.mxu0
        %v1926 = vadd.f32 %v1842, %v1925
        %v1927 = vpop.f32.mrf.mxu0
        %v1928 = vpop.f32.mrf.mxu0
        %v1929 = vpop.f32.mrf.mxu0
        %1930 = vdwg.mxu0
        %1931 = vst [vmem:[%s349] sm:$0xff] %v1926
        %s1932 = sand.u32 %s193, 1
        %s1933 = scalar_lea.sflag [#allocation5], %s1932
        %s1934 = sand.u32 %s193, 1
        %s1935 = smul.addr %s1934, 8
        %s1936 = scalar_lea.vmem [#allocation9], %s1935
        // Predicated region
        $region61: #{tpu_custom_call.1} parent=47 // pred_check
          %p1937 = pneg %p203
        $region62: #{tpu_custom_call.1} parent=47 // pred_check_branch
          %1939 = sbr.rel (%p1937) target = $region64
        $region63: #{tpu_custom_call.1} parent=47 // pred_region
          %s1941 = ssub.s32 128, 128
          %1942 = vsyncadd %s1933, %s1941
          %s1943 = smul.addr %s23, 128
          %s1944 = scalar_lea.hbm %s7, %s1943
          %s1946 = sshll.u32 %s1936, 4
          %s1947 = int_to_ptr.vmem [resolvable:$true] %s1946
          %1949 = dma.vmem_to_hbm [thread:$0]  %s1947, 128, %s1944, %s1933
        $region64: #{tpu_custom_call.1} parent=47 // pred_fallthru
          _
      $region48: #{tpu_custom_call.1} parent=5 // pred_fallthru
        _
      %p1950 = scmp.le.s32.totalorder 2, %s18
      // Predicated region
      $region65: #{tpu_custom_call.1} parent=5 // pred_check
        %p1951 = pneg %p1950
      $region66: #{tpu_custom_call.1} parent=5 // pred_check_branch
        %1953 = sbr.rel (%p1951) target = $region68
      $region67: #{tpu_custom_call.1} parent=5 // pred_region
        %s1954 = ssub.s32 %s18, 2
        // Predicated region
        $region69: #{tpu_custom_call.1} parent=67 // pred_check
          %p1955 = pneg %p209
        $region70: #{tpu_custom_call.1} parent=67 // pred_check_branch
          %1957 = sbr.rel (%p1955) target = $region72
        $region71: #{tpu_custom_call.1} parent=67 // pred_region
          %s1958 = sand.u32 %s194, 1
          %s1959 = scalar_lea.sflag [#allocation5], %s1958
          %s1960 = sand.u32 %s194, 1
          %s1961 = smul.addr %s1960, 8
          %s1962 = scalar_lea.vmem [#allocation9], %s1961
          %1963 = dma.done %s1959, 128
        $region72: #{tpu_custom_call.1} parent=67 // pred_fallthru
          _
      $region68: #{tpu_custom_call.1} parent=5 // pred_fallthru
        _
    $region6: #{tpu_custom_call.1} parent=1 // loop_footer
      %s22 = sadd.s32 1, %s18
    $region7: #{tpu_custom_call.1} parent=1 // loop_footer_branch
      %17 = sbr.rel target = $region3
    $region8: #{tpu_custom_call.1} parent=1 // loop_exit
      _
    %1964 = vsyncpa [#allocation4], 1
    %s1965 = scalar_lea.sflag [#allocation4], 1
    %1966 = vsyncpa %s1965, 1
    %1967 = vsyncpa [#allocation7], 1
    %1968 = vsyncpa [#allocation5], 1
    %s1969 = scalar_lea.sflag [#allocation5], 1
    %1970 = vsyncpa %s1969, 1

</llo_original>
